<compile_context>
chip_gen: v7x
topology: tpu7x:2x2x1
jax: 0.10.0
libtpu: 0.0.40
codegen_flags: <defaults>
</compile_context>

<pallas_src>
import math
import numpy as np
import jax
import jax.numpy as jnp
from jax.experimental import pallas as pl
from jax.experimental.pallas import tpu as pltpu

# ----- model dims (small, consistent with the module's forward) -----
B = 2          # batch
T = 8          # sequence length
D = 32         # in_dim == emb_dim
H = 4          # num_heads
HD = D // H    # head_dim
F = 64         # dim_feedforward
EPS = 1e-5     # nn.LayerNorm default eps
BT = B * T

# packed-slab column offsets (every slice start is a 128-lane boundary)
_WQKV_OFF = 0      # cols [0, 96):    QKV weight, cols permuted [Q|K|V] head-major, Q pre-scaled
_WO_OFF = 128      # cols [128, 160): output projection weight
_W1_OFF = 256      # cols [256, 320): FFN first weight
_PP_OFF = 384      # cols [384, 512): rows 0..7 hold the packed 1-D row params
_SLAB_W = 512


def _layernorm(x, gamma, beta):
    mu = jnp.mean(x, axis=-1, keepdims=True)
    var = jnp.mean((x - mu) ** 2, axis=-1, keepdims=True)
    return (x - mu) * jax.lax.rsqrt(var + EPS) * gamma + beta


def encoder_block_kernel(
    x_ref,        # (BT, D)
    slab_ref,     # (D, 512) packed wqkv | wo | w1 | row-params
    w2_ref,       # (F, D)
    out_ref,      # (BT, D)
):
    x = x_ref[...].astype(jnp.float32)                                  # (BT, D)

    # ---- unpack the weight slab (static, 128-aligned slices) ----
    wqkv = slab_ref[:, _WQKV_OFF:_WQKV_OFF + 3 * D]                     # (D, 3D)
    wo   = slab_ref[:, _WO_OFF:_WO_OFF + D]                             # (D, D)
    w1   = slab_ref[:, _W1_OFF:_W1_OFF + F]                             # (D, F)
    bqkv = slab_ref[0, _PP_OFF:_PP_OFF + 3 * D]                         # (96,) Q part pre-scaled
    bo   = slab_ref[1, _PP_OFF:_PP_OFF + D]
    g1   = slab_ref[2, _PP_OFF:_PP_OFF + D]
    be1  = slab_ref[3, _PP_OFF:_PP_OFF + D]
    bf1  = slab_ref[4, _PP_OFF:_PP_OFF + F]
    bf2  = slab_ref[5, _PP_OFF:_PP_OFF + D]
    g2   = slab_ref[6, _PP_OFF:_PP_OFF + D]
    be2  = slab_ref[7, _PP_OFF:_PP_OFF + D]

    # ---- QKV projection (columns ordered [Q | K | V], head-major; Q scaled) ----
    qkv = jnp.dot(x, wqkv, preferred_element_type=jnp.float32) + bqkv   # (BT, 3D)
    q = qkv[:, 0 * D:1 * D]
    k = qkv[:, 1 * D:2 * D]
    v = qkv[:, 2 * D:3 * D]

    def split_heads(m):
        # (BT, H*HD) head-major columns -> (H*B, T, HD); batch index z = h*B + b.
        # Concatenation is along the LEADING axis (tile-granular, no lane shuffles).
        return jnp.concatenate(
            [m[:, h * HD:(h + 1) * HD].reshape(B, T, HD) for h in range(H)], axis=0)

    qh, kh, vh = split_heads(q), split_heads(k), split_heads(v)          # (HB, T, HD)

    # ---- single batched attention over all (head, batch) pairs ----
    s = jnp.einsum("ztd,zsd->zts", qh, kh,
                   preferred_element_type=jnp.float32)                   # (HB, T, T)
    s = s - jnp.max(s, axis=-1, keepdims=True)
    p = jnp.exp(s)
    denom = jnp.sum(p, axis=-1, keepdims=True)
    r = pl.reciprocal(denom, approx=True)                                # EUP slot
    r = r * (2.0 - denom * r)                                            # one Newton refine
    attn = p * r
    o = jnp.einsum("zts,zsd->ztd", attn, vh,
                   preferred_element_type=jnp.float32)                   # (HB, T, HD)

    # ---- output projection folded per head (no lane-axis concat) ----
    # concat_h(o_h) @ wo  ==  sum_h o_h @ wo[h*HD:(h+1)*HD, :]
    acc = None
    for h in range(H):                                                   # unrolled, H=4
        oh = o[h * B:(h + 1) * B].reshape(BT, HD)                        # (BT, HD)
        ph = jnp.dot(oh, wo[h * HD:(h + 1) * HD, :],
                     preferred_element_type=jnp.float32)                 # (BT, D)
        acc = ph if acc is None else acc + ph
    attn_out = acc + bo

    # ---- residual + LayerNorm1 ----
    x1 = _layernorm(x + attn_out, g1, be1)

    # ---- feed-forward (Linear -> ReLU -> Linear) + residual + LayerNorm2 ----
    hdn = jnp.maximum(jnp.dot(x1, w1, preferred_element_type=jnp.float32) + bf1, 0.0)
    ff = jnp.dot(hdn, w2_ref[...], preferred_element_type=jnp.float32) + bf2
    x2 = _layernorm(x1 + ff, g2, be2)

    out_ref[...] = x2.astype(out_ref.dtype)


def pack_params(params):
    """One-time host-side preprocessing of the module constants."""
    (wqkv, bqkv, wo, bo, g1, be1, w1, bf1, w2, bf2, g2, be2) = params

    # Permute QKV columns from per-head [q|k|v] blocks to [Q all-heads | K | V].
    perm = np.concatenate([np.arange(HD) + h * 3 * HD + part * HD
                           for part in range(3) for h in range(H)])
    wqkv_p = jnp.asarray(wqkv)[:, perm]
    bqkv_p = jnp.asarray(bqkv)[:, perm]

    # Fold the 1/sqrt(HD) attention scale into the Q columns (weight AND bias).
    scale = 1.0 / math.sqrt(HD)
    col_scale = jnp.concatenate([jnp.full((D,), scale, jnp.float32),
                                 jnp.ones((2 * D,), jnp.float32)])
    wqkv_s = wqkv_p * col_scale[None, :]
    bqkv_s = bqkv_p * col_scale[None, :]

    def pad_cols(w):                       # pad a 32-row weight to 128 lanes
        w = w.astype(jnp.float32)
        return jnp.pad(w, ((0, 0), (0, 128 - w.shape[1])))

    def row(v):                            # pad a small 1-D param to one 128-lane row
        v = jnp.asarray(v, jnp.float32).reshape(-1)
        return jnp.pad(v, (0, 128 - v.shape[0]))

    pp = jnp.stack([row(bqkv_s), row(bo), row(g1), row(be1),
                    row(bf1), row(bf2), row(g2), row(be2)], axis=0)      # (8, 128)
    pp = jnp.pad(pp, ((0, D - 8), (0, 0)))                               # (32, 128)

    slab = jnp.concatenate(
        [pad_cols(wqkv_s), pad_cols(wo), pad_cols(w1), pp], axis=1)      # (32, 512)
    assert slab.shape == (D, _SLAB_W)
    return slab, jnp.asarray(w2, jnp.float32)


def encoder_block(x, packed):
    slab, w2 = packed
    x2d = x.reshape(BT, D)                                   # free reshape in HBM

    vmem = pltpu.MemorySpace.VMEM
    out = pl.pallas_call(
        encoder_block_kernel,
        out_shape=jax.ShapeDtypeStruct((BT, D), jnp.float32),
        in_specs=[pl.BlockSpec(memory_space=vmem),           # x (flattened)
                  pl.BlockSpec(memory_space=vmem),           # packed weight slab
                  pl.BlockSpec(memory_space=vmem)],          # w2
        out_specs=pl.BlockSpec(memory_space=vmem),
    )(x2d, slab, w2)

    return out.reshape(B, T, D)


def encoder_block_ref(x, params):
    """Pure-JAX reference mirroring the PyTorch forward (dropout=0, mask=None)."""
    (wqkv, bqkv, wo, bo, g1, be1, w1, bf1, w2, bf2, g2, be2) = params
    qkv = x @ wqkv + bqkv[0]                                    # (B, T, 3D)
    qkv = qkv.reshape(B, T, H, 3 * HD).transpose(0, 2, 1, 3)    # (B, H, T, 3HD)
    q, k, v = qkv[..., :HD], qkv[..., HD:2 * HD], qkv[..., 2 * HD:]
    scores = jnp.einsum("bhtd,bhsd->bhts", q, k) / math.sqrt(HD)
    attn = jax.nn.softmax(scores, axis=-1)
    vals = jnp.einsum("bhts,bhsd->bhtd", attn, v)
    vals = vals.transpose(0, 2, 1, 3).reshape(B, T, D)
    atten_out = vals @ wo + bo[0]
    x1 = _layernorm(x + atten_out, g1[0], be1[0])
    ff = jnp.maximum(x1 @ w1 + bf1[0], 0.0) @ w2 + bf2[0]
    return _layernorm(x1 + ff, g2[0], be2[0])


def init_params(key):
    ks = jax.random.split(key, 6)

    def xavier_uniform(k, fan_in, fan_out, shape):
        lim = math.sqrt(6.0 / (fan_in + fan_out))
        return jax.random.uniform(k, shape, jnp.float32, -lim, lim)

    # weights stored as (in, out) == torch weight.T
    wqkv = xavier_uniform(ks[0], D, 3 * D, (D, 3 * D))
    bqkv = jnp.zeros((1, 3 * D), jnp.float32)
    wo = jax.random.normal(ks[1], (D, D), jnp.float32) * math.sqrt(2.0 / (D + D))
    bo = jnp.zeros((1, D), jnp.float32)
    g1 = jnp.ones((1, D), jnp.float32)
    be1 = jnp.zeros((1, D), jnp.float32)
    w1 = xavier_uniform(ks[2], D, F, (D, F))
    bf1 = jax.random.normal(ks[3], (1, F), jnp.float32) * 0.02
    w2 = xavier_uniform(ks[4], F, D, (F, D))
    bf2 = jax.random.normal(ks[5], (1, D), jnp.float32) * 0.02
    g2 = jnp.ones((1, D), jnp.float32)
    be2 = jnp.zeros((1, D), jnp.float32)
    return (wqkv, bqkv, wo, bo, g1, be1, w1, bf1, w2, bf2, g2, be2)


if __name__ == "__main__":
    key = jax.random.PRNGKey(0)
    kx, kp = jax.random.split(key)
    x = jax.random.normal(kx, (B, T, D), jnp.float32)
    params = init_params(kp)

    packed = pack_params(params)            # one-time constant preprocessing
    out = encoder_block(x, packed)
    out = jax.block_until_ready(out)

    ref = encoder_block_ref(x, params)
    assert out.shape == (B, T, D)
    assert jnp.allclose(out, ref, atol=1e-4, rtol=1e-4), (
        f"max abs err = {float(jnp.max(jnp.abs(out - ref)))}")

    print("KERNEL_OK")
</pallas_src>

<mosaic_0001>
module attributes {stable_mosaic.version = 11 : i64} {
  func.func @encoder_block_kernel(%arg0: memref<16x32xf32, #tpu.memory_space<vmem>>, %arg1: memref<32x512xf32, #tpu.memory_space<vmem>>, %arg2: memref<64x32xf32, #tpu.memory_space<vmem>>, %arg3: memref<16x32xf32, #tpu.memory_space<vmem>>) attributes {dimension_semantics = [], scalar_prefetch = 0 : i64, scratch_operands = 0 : i64, tpu.core_type = #tpu.core_type<tc>} {
    %c0 = arith.constant 0 : index
    %c0_0 = arith.constant 0 : index
    %0 = vector.load %arg0[%c0, %c0_0] : memref<16x32xf32, #tpu.memory_space<vmem>>, vector<16x32xf32>
    %c0_1 = arith.constant 0 : index
    %c0_2 = arith.constant 0 : index
    %1 = vector.load %arg1[%c0_1, %c0_2] : memref<32x512xf32, #tpu.memory_space<vmem>>, vector<32x96xf32>
    %c0_3 = arith.constant 0 : index
    %c128 = arith.constant 128 : index
    %2 = vector.load %arg1[%c0_3, %c128] : memref<32x512xf32, #tpu.memory_space<vmem>>, vector<32x32xf32>
    %c0_4 = arith.constant 0 : index
    %c256 = arith.constant 256 : index
    %3 = vector.load %arg1[%c0_4, %c256] : memref<32x512xf32, #tpu.memory_space<vmem>>, vector<32x64xf32>
    %c0_5 = arith.constant 0 : index
    %c384 = arith.constant 384 : index
    %4 = vector.load %arg1[%c0_5, %c384] : memref<32x512xf32, #tpu.memory_space<vmem>>, vector<1x96xf32>
    %5 = vector.shape_cast %4 : vector<1x96xf32> to vector<96xf32>
    %c1 = arith.constant 1 : index
    %c384_6 = arith.constant 384 : index
    %6 = vector.load %arg1[%c1, %c384_6] : memref<32x512xf32, #tpu.memory_space<vmem>>, vector<1x32xf32>
    %7 = vector.shape_cast %6 : vector<1x32xf32> to vector<32xf32>
    %c2 = arith.constant 2 : index
    %c384_7 = arith.constant 384 : index
    %8 = vector.load %arg1[%c2, %c384_7] : memref<32x512xf32, #tpu.memory_space<vmem>>, vector<1x32xf32>
    %9 = vector.shape_cast %8 : vector<1x32xf32> to vector<32xf32>
    %c3 = arith.constant 3 : index
    %c384_8 = arith.constant 384 : index
    %10 = vector.load %arg1[%c3, %c384_8] : memref<32x512xf32, #tpu.memory_space<vmem>>, vector<1x32xf32>
    %11 = vector.shape_cast %10 : vector<1x32xf32> to vector<32xf32>
    %c4 = arith.constant 4 : index
    %c384_9 = arith.constant 384 : index
    %12 = vector.load %arg1[%c4, %c384_9] : memref<32x512xf32, #tpu.memory_space<vmem>>, vector<1x64xf32>
    %13 = vector.shape_cast %12 : vector<1x64xf32> to vector<64xf32>
    %c5 = arith.constant 5 : index
    %c384_10 = arith.constant 384 : index
    %14 = vector.load %arg1[%c5, %c384_10] : memref<32x512xf32, #tpu.memory_space<vmem>>, vector<1x32xf32>
    %15 = vector.shape_cast %14 : vector<1x32xf32> to vector<32xf32>
    %c6 = arith.constant 6 : index
    %c384_11 = arith.constant 384 : index
    %16 = vector.load %arg1[%c6, %c384_11] : memref<32x512xf32, #tpu.memory_space<vmem>>, vector<1x32xf32>
    %17 = vector.shape_cast %16 : vector<1x32xf32> to vector<32xf32>
    %c7 = arith.constant 7 : index
    %c384_12 = arith.constant 384 : index
    %18 = vector.load %arg1[%c7, %c384_12] : memref<32x512xf32, #tpu.memory_space<vmem>>, vector<1x32xf32>
    %19 = vector.shape_cast %18 : vector<1x32xf32> to vector<32xf32>
    %cst = arith.constant dense<0.000000e+00> : vector<16x96xf32>
    %20 = tpu.matmul %0, %1, %cst {dimension_numbers = #tpu.dot_dimension_numbers<[1], [0], [0], [1], [0, 0, 1, 1], [], []>} : vector<16x32xf32>, vector<32x96xf32>, vector<16x96xf32> -> vector<16x96xf32>
    %21 = vector.shape_cast %5 : vector<96xf32> to vector<1x96xf32>
    %22 = vector.broadcast %21 : vector<1x96xf32> to vector<16x96xf32>
    %23 = arith.addf %20, %22 : vector<16x96xf32>
    %24 = vector.extract_strided_slice %23 {offsets = [0, 0], sizes = [16, 32], strides = [1, 1]} : vector<16x96xf32> to vector<16x32xf32>
    %25 = vector.extract_strided_slice %23 {offsets = [0, 32], sizes = [16, 32], strides = [1, 1]} : vector<16x96xf32> to vector<16x32xf32>
    %26 = vector.extract_strided_slice %23 {offsets = [0, 64], sizes = [16, 32], strides = [1, 1]} : vector<16x96xf32> to vector<16x32xf32>
    %27 = vector.extract_strided_slice %24 {offsets = [0, 0], sizes = [16, 8], strides = [1, 1]} : vector<16x32xf32> to vector<16x8xf32>
    %28 = vector.shape_cast %27 : vector<16x8xf32> to vector<2x8x8xf32>
    %29 = vector.extract_strided_slice %24 {offsets = [0, 8], sizes = [16, 8], strides = [1, 1]} : vector<16x32xf32> to vector<16x8xf32>
    %30 = vector.shape_cast %29 : vector<16x8xf32> to vector<2x8x8xf32>
    %31 = vector.extract_strided_slice %24 {offsets = [0, 16], sizes = [16, 8], strides = [1, 1]} : vector<16x32xf32> to vector<16x8xf32>
    %32 = vector.shape_cast %31 : vector<16x8xf32> to vector<2x8x8xf32>
    %33 = vector.extract_strided_slice %24 {offsets = [0, 24], sizes = [16, 8], strides = [1, 1]} : vector<16x32xf32> to vector<16x8xf32>
    %34 = vector.shape_cast %33 : vector<16x8xf32> to vector<2x8x8xf32>
    %35 = tpu.concatenate %28, %30, %32, %34 in 0 : vector<2x8x8xf32>, vector<2x8x8xf32>, vector<2x8x8xf32>, vector<2x8x8xf32> -> vector<8x8x8xf32>
    %36 = vector.extract_strided_slice %25 {offsets = [0, 0], sizes = [16, 8], strides = [1, 1]} : vector<16x32xf32> to vector<16x8xf32>
    %37 = vector.shape_cast %36 : vector<16x8xf32> to vector<2x8x8xf32>
    %38 = vector.extract_strided_slice %25 {offsets = [0, 8], sizes = [16, 8], strides = [1, 1]} : vector<16x32xf32> to vector<16x8xf32>
    %39 = vector.shape_cast %38 : vector<16x8xf32> to vector<2x8x8xf32>
    %40 = vector.extract_strided_slice %25 {offsets = [0, 16], sizes = [16, 8], strides = [1, 1]} : vector<16x32xf32> to vector<16x8xf32>
    %41 = vector.shape_cast %40 : vector<16x8xf32> to vector<2x8x8xf32>
    %42 = vector.extract_strided_slice %25 {offsets = [0, 24], sizes = [16, 8], strides = [1, 1]} : vector<16x32xf32> to vector<16x8xf32>
    %43 = vector.shape_cast %42 : vector<16x8xf32> to vector<2x8x8xf32>
    %44 = tpu.concatenate %37, %39, %41, %43 in 0 : vector<2x8x8xf32>, vector<2x8x8xf32>, vector<2x8x8xf32>, vector<2x8x8xf32> -> vector<8x8x8xf32>
    %45 = vector.extract_strided_slice %26 {offsets = [0, 0], sizes = [16, 8], strides = [1, 1]} : vector<16x32xf32> to vector<16x8xf32>
    %46 = vector.shape_cast %45 : vector<16x8xf32> to vector<2x8x8xf32>
    %47 = vector.extract_strided_slice %26 {offsets = [0, 8], sizes = [16, 8], strides = [1, 1]} : vector<16x32xf32> to vector<16x8xf32>
    %48 = vector.shape_cast %47 : vector<16x8xf32> to vector<2x8x8xf32>
    %49 = vector.extract_strided_slice %26 {offsets = [0, 16], sizes = [16, 8], strides = [1, 1]} : vector<16x32xf32> to vector<16x8xf32>
    %50 = vector.shape_cast %49 : vector<16x8xf32> to vector<2x8x8xf32>
    %51 = vector.extract_strided_slice %26 {offsets = [0, 24], sizes = [16, 8], strides = [1, 1]} : vector<16x32xf32> to vector<16x8xf32>
    %52 = vector.shape_cast %51 : vector<16x8xf32> to vector<2x8x8xf32>
    %53 = tpu.concatenate %46, %48, %50, %52 in 0 : vector<2x8x8xf32>, vector<2x8x8xf32>, vector<2x8x8xf32>, vector<2x8x8xf32> -> vector<8x8x8xf32>
    "tpu.trace_start"() <{level = 10 : i32, message = "ztd,zsd->zts"}> : () -> ()
    %cst_13 = arith.constant dense<0.000000e+00> : vector<8x8x8xf32>
    %54 = tpu.matmul %35, %44, %cst_13 {dimension_numbers = #tpu.dot_dimension_numbers<[2], [2], [1], [1], [0, 0, 0, 1, 1, 1], [0], [0]>} : vector<8x8x8xf32>, vector<8x8x8xf32>, vector<8x8x8xf32> -> vector<8x8x8xf32>
    "tpu.trace_stop"() : () -> ()
    %cst_14 = arith.constant dense<0xFF800000> : vector<8x8xf32>
    %55 = vector.multi_reduction <maximumf>, %54, %cst_14 [2] : vector<8x8x8xf32> to vector<8x8xf32>
    %56 = vector.shape_cast %55 : vector<8x8xf32> to vector<8x8x1xf32>
    %57 = vector.broadcast %56 : vector<8x8x1xf32> to vector<8x8x8xf32>
    %58 = arith.subf %54, %57 : vector<8x8x8xf32>
    %59 = math.exp %58 : vector<8x8x8xf32>
    %cst_15 = arith.constant dense<0.000000e+00> : vector<8x8xf32>
    %60 = vector.multi_reduction <add>, %59, %cst_15 [2] : vector<8x8x8xf32> to vector<8x8xf32>
    %61 = vector.shape_cast %60 : vector<8x8xf32> to vector<8x8x1xf32>
    %62 = tpu.reciprocal %61 {approx = true} : vector<8x8x1xf32> -> vector<8x8x1xf32>
    %63 = arith.mulf %61, %62 : vector<8x8x1xf32>
    %cst_16 = arith.constant 2.000000e+00 : f32
    %64 = vector.broadcast %cst_16 : f32 to vector<8x8x1xf32>
    %65 = arith.subf %64, %63 : vector<8x8x1xf32>
    %66 = arith.mulf %62, %65 : vector<8x8x1xf32>
    %67 = vector.broadcast %66 : vector<8x8x1xf32> to vector<8x8x8xf32>
    %68 = arith.mulf %59, %67 : vector<8x8x8xf32>
    "tpu.trace_start"() <{level = 10 : i32, message = "zts,zsd->ztd"}> : () -> ()
    %cst_17 = arith.constant dense<0.000000e+00> : vector<8x8x8xf32>
    %69 = tpu.matmul %68, %53, %cst_17 {dimension_numbers = #tpu.dot_dimension_numbers<[2], [1], [1], [2], [0, 0, 0, 1, 1, 2], [0], [0]>} : vector<8x8x8xf32>, vector<8x8x8xf32>, vector<8x8x8xf32> -> vector<8x8x8xf32>
    "tpu.trace_stop"() : () -> ()
    %70 = vector.extract_strided_slice %69 {offsets = [0, 0, 0], sizes = [2, 8, 8], strides = [1, 1, 1]} : vector<8x8x8xf32> to vector<2x8x8xf32>
    %71 = vector.shape_cast %70 : vector<2x8x8xf32> to vector<16x8xf32>
    %72 = vector.extract_strided_slice %2 {offsets = [0, 0], sizes = [8, 32], strides = [1, 1]} : vector<32x32xf32> to vector<8x32xf32>
    %cst_18 = arith.constant dense<0.000000e+00> : vector<16x32xf32>
    %73 = tpu.matmul %71, %72, %cst_18 {dimension_numbers = #tpu.dot_dimension_numbers<[1], [0], [0], [1], [0, 0, 1, 1], [], []>} : vector<16x8xf32>, vector<8x32xf32>, vector<16x32xf32> -> vector<16x32xf32>
    %74 = vector.extract_strided_slice %69 {offsets = [2, 0, 0], sizes = [2, 8, 8], strides = [1, 1, 1]} : vector<8x8x8xf32> to vector<2x8x8xf32>
    %75 = vector.shape_cast %74 : vector<2x8x8xf32> to vector<16x8xf32>
    %76 = vector.extract_strided_slice %2 {offsets = [8, 0], sizes = [8, 32], strides = [1, 1]} : vector<32x32xf32> to vector<8x32xf32>
    %cst_19 = arith.constant dense<0.000000e+00> : vector<16x32xf32>
    %77 = tpu.matmul %75, %76, %cst_19 {dimension_numbers = #tpu.dot_dimension_numbers<[1], [0], [0], [1], [0, 0, 1, 1], [], []>} : vector<16x8xf32>, vector<8x32xf32>, vector<16x32xf32> -> vector<16x32xf32>
    %78 = arith.addf %73, %77 : vector<16x32xf32>
    %79 = vector.extract_strided_slice %69 {offsets = [4, 0, 0], sizes = [2, 8, 8], strides = [1, 1, 1]} : vector<8x8x8xf32> to vector<2x8x8xf32>
    %80 = vector.shape_cast %79 : vector<2x8x8xf32> to vector<16x8xf32>
    %81 = vector.extract_strided_slice %2 {offsets = [16, 0], sizes = [8, 32], strides = [1, 1]} : vector<32x32xf32> to vector<8x32xf32>
    %cst_20 = arith.constant dense<0.000000e+00> : vector<16x32xf32>
    %82 = tpu.matmul %80, %81, %cst_20 {dimension_numbers = #tpu.dot_dimension_numbers<[1], [0], [0], [1], [0, 0, 1, 1], [], []>} : vector<16x8xf32>, vector<8x32xf32>, vector<16x32xf32> -> vector<16x32xf32>
    %83 = arith.addf %78, %82 : vector<16x32xf32>
    %84 = vector.extract_strided_slice %69 {offsets = [6, 0, 0], sizes = [2, 8, 8], strides = [1, 1, 1]} : vector<8x8x8xf32> to vector<2x8x8xf32>
    %85 = vector.shape_cast %84 : vector<2x8x8xf32> to vector<16x8xf32>
    %86 = vector.extract_strided_slice %2 {offsets = [24, 0], sizes = [8, 32], strides = [1, 1]} : vector<32x32xf32> to vector<8x32xf32>
    %cst_21 = arith.constant dense<0.000000e+00> : vector<16x32xf32>
    %87 = tpu.matmul %85, %86, %cst_21 {dimension_numbers = #tpu.dot_dimension_numbers<[1], [0], [0], [1], [0, 0, 1, 1], [], []>} : vector<16x8xf32>, vector<8x32xf32>, vector<16x32xf32> -> vector<16x32xf32>
    %88 = arith.addf %83, %87 : vector<16x32xf32>
    %89 = vector.shape_cast %7 : vector<32xf32> to vector<1x32xf32>
    %90 = vector.broadcast %89 : vector<1x32xf32> to vector<16x32xf32>
    %91 = arith.addf %88, %90 : vector<16x32xf32>
    %92 = arith.addf %0, %91 : vector<16x32xf32>
    %cst_22 = arith.constant dense<0.000000e+00> : vector<16xf32>
    %93 = vector.multi_reduction <add>, %92, %cst_22 [1] : vector<16x32xf32> to vector<16xf32>
    %94 = vector.shape_cast %93 : vector<16xf32> to vector<16x1xf32>
    %cst_23 = arith.constant 3.200000e+01 : f32
    %95 = vector.broadcast %cst_23 : f32 to vector<16x1xf32>
    %96 = arith.divf %94, %95 : vector<16x1xf32>
    %97 = vector.broadcast %96 : vector<16x1xf32> to vector<16x32xf32>
    %98 = arith.subf %92, %97 : vector<16x32xf32>
    %99 = arith.mulf %98, %98 : vector<16x32xf32>
    %cst_24 = arith.constant dense<0.000000e+00> : vector<16xf32>
    %100 = vector.multi_reduction <add>, %99, %cst_24 [1] : vector<16x32xf32> to vector<16xf32>
    %101 = vector.shape_cast %100 : vector<16xf32> to vector<16x1xf32>
    %cst_25 = arith.constant 3.200000e+01 : f32
    %102 = vector.broadcast %cst_25 : f32 to vector<16x1xf32>
    %103 = arith.divf %101, %102 : vector<16x1xf32>
    %104 = vector.broadcast %96 : vector<16x1xf32> to vector<16x32xf32>
    %105 = arith.subf %92, %104 : vector<16x32xf32>
    %cst_26 = arith.constant 9.99999974E-6 : f32
    %106 = vector.broadcast %cst_26 : f32 to vector<16x1xf32>
    %107 = arith.addf %103, %106 : vector<16x1xf32>
    %108 = math.rsqrt %107 : vector<16x1xf32>
    %109 = vector.broadcast %108 : vector<16x1xf32> to vector<16x32xf32>
    %110 = arith.mulf %105, %109 : vector<16x32xf32>
    %111 = vector.shape_cast %9 : vector<32xf32> to vector<1x32xf32>
    %112 = vector.broadcast %111 : vector<1x32xf32> to vector<16x32xf32>
    %113 = arith.mulf %110, %112 : vector<16x32xf32>
    %114 = vector.shape_cast %11 : vector<32xf32> to vector<1x32xf32>
    %115 = vector.broadcast %114 : vector<1x32xf32> to vector<16x32xf32>
    %116 = arith.addf %113, %115 : vector<16x32xf32>
    %cst_27 = arith.constant dense<0.000000e+00> : vector<16x64xf32>
    %117 = tpu.matmul %116, %3, %cst_27 {dimension_numbers = #tpu.dot_dimension_numbers<[1], [0], [0], [1], [0, 0, 1, 1], [], []>} : vector<16x32xf32>, vector<32x64xf32>, vector<16x64xf32> -> vector<16x64xf32>
    %118 = vector.shape_cast %13 : vector<64xf32> to vector<1x64xf32>
    %119 = vector.broadcast %118 : vector<1x64xf32> to vector<16x64xf32>
    %120 = arith.addf %117, %119 : vector<16x64xf32>
    %cst_28 = arith.constant 0.000000e+00 : f32
    %121 = vector.broadcast %cst_28 : f32 to vector<16x64xf32>
    %122 = arith.maximumf %120, %121 : vector<16x64xf32>
    %c0_29 = arith.constant 0 : index
    %c0_30 = arith.constant 0 : index
    %123 = vector.load %arg2[%c0_29, %c0_30] : memref<64x32xf32, #tpu.memory_space<vmem>>, vector<64x32xf32>
    %cst_31 = arith.constant dense<0.000000e+00> : vector<16x32xf32>
    %124 = tpu.matmul %122, %123, %cst_31 {dimension_numbers = #tpu.dot_dimension_numbers<[1], [0], [0], [1], [0, 0, 1, 1], [], []>} : vector<16x64xf32>, vector<64x32xf32>, vector<16x32xf32> -> vector<16x32xf32>
    %125 = vector.shape_cast %15 : vector<32xf32> to vector<1x32xf32>
    %126 = vector.broadcast %125 : vector<1x32xf32> to vector<16x32xf32>
    %127 = arith.addf %124, %126 : vector<16x32xf32>
    %128 = arith.addf %116, %127 : vector<16x32xf32>
    %cst_32 = arith.constant dense<0.000000e+00> : vector<16xf32>
    %129 = vector.multi_reduction <add>, %128, %cst_32 [1] : vector<16x32xf32> to vector<16xf32>
    %130 = vector.shape_cast %129 : vector<16xf32> to vector<16x1xf32>
    %cst_33 = arith.constant 3.200000e+01 : f32
    %131 = vector.broadcast %cst_33 : f32 to vector<16x1xf32>
    %132 = arith.divf %130, %131 : vector<16x1xf32>
    %133 = vector.broadcast %132 : vector<16x1xf32> to vector<16x32xf32>
    %134 = arith.subf %128, %133 : vector<16x32xf32>
    %135 = arith.mulf %134, %134 : vector<16x32xf32>
    %cst_34 = arith.constant dense<0.000000e+00> : vector<16xf32>
    %136 = vector.multi_reduction <add>, %135, %cst_34 [1] : vector<16x32xf32> to vector<16xf32>
    %137 = vector.shape_cast %136 : vector<16xf32> to vector<16x1xf32>
    %cst_35 = arith.constant 3.200000e+01 : f32
    %138 = vector.broadcast %cst_35 : f32 to vector<16x1xf32>
    %139 = arith.divf %137, %138 : vector<16x1xf32>
    %140 = vector.broadcast %132 : vector<16x1xf32> to vector<16x32xf32>
    %141 = arith.subf %128, %140 : vector<16x32xf32>
    %cst_36 = arith.constant 9.99999974E-6 : f32
    %142 = vector.broadcast %cst_36 : f32 to vector<16x1xf32>
    %143 = arith.addf %139, %142 : vector<16x1xf32>
    %144 = math.rsqrt %143 : vector<16x1xf32>
    %145 = vector.broadcast %144 : vector<16x1xf32> to vector<16x32xf32>
    %146 = arith.mulf %141, %145 : vector<16x32xf32>
    %147 = vector.shape_cast %17 : vector<32xf32> to vector<1x32xf32>
    %148 = vector.broadcast %147 : vector<1x32xf32> to vector<16x32xf32>
    %149 = arith.mulf %146, %148 : vector<16x32xf32>
    %150 = vector.shape_cast %19 : vector<32xf32> to vector<1x32xf32>
    %151 = vector.broadcast %150 : vector<1x32xf32> to vector<16x32xf32>
    %152 = arith.addf %149, %151 : vector<16x32xf32>
    %c0_37 = arith.constant 0 : index
    %c0_38 = arith.constant 0 : index
    %153 = vector.load %arg3[%c0_37, %c0_38] : memref<16x32xf32, #tpu.memory_space<vmem>>, vector<16x32xf32>
    tpu.vector_store %arg3[%c0_37, %c0_38], %152 {strides = array<i32>} : memref<16x32xf32, #tpu.memory_space<vmem>>, vector<16x32xf32>,
    return
  }
}

</mosaic_0001>

<llo_original>
// kernel: tpu_custom_call.1
$region0: #{tpu_custom_call.1}
  #allocation0 [shape = 'u32[]', space=smem, size = 0x4, offset = 0x4, fixed_abs, tag = 'smem constant byte address 0x4 - core index']
  #allocation1 [shape = 'u32[144,128]{1,0:T(1,128)}', space=vmem, size = 0x12000, scoped, tag = 'internal scratch']
  %s0 = inlined_call_operand.vmem [shape: f32[16,32], index: 0, kind: input, shape index: {}]
  %s1 = inlined_call_operand.hbm [shape: f32[32,512], index: 1, kind: input, shape index: {}]
  %s2 = inlined_call_operand.vmem [shape: f32[64,32], index: 2, kind: input, shape index: {}]
  %s3 = inlined_call_operand.hbm [shape: f32[16,32], index: 3, kind: output, shape index: {}]
  %s4 = sld [smem:[#allocation0]]
  $region26: #{tpu_custom_call.1} parent=0
    _
  %s6 = ssub.s32 1, %s4
  %s7 = scalar_select 0, %s6, %s4
  $region1: #{tpu_custom_call.1} parent=0
    #allocation2 [shape = 'u8[65536]{0}', space=vmem, size = 0x10000, scoped, tag = 'input window, operand 1, single buffered']
    #allocation3 [shape = 's32[1]{0}', space=sflag, size = 0x4, scoped, tag = 'scoped memory for tpu_custom_call.1']
    #allocation4 [shape = 's32[1]{0}', space=sflag, size = 0x4, scoped, tag = 'scoped memory for tpu_custom_call.1']
    #allocation5 [shape = 'u8[8192]{0}', space=vmem, size = 0x2000, scoped, tag = 'output window, operand 0, single buffered']
    %8 = vsyncpa [#allocation3], 0
    %9 = vsyncpa [#allocation4], 0
    // Predicated region
    $region2: #{tpu_custom_call.1} parent=1 // pred_check
      _
    $region3: #{tpu_custom_call.1} parent=1 // pred_check_branch
      %11 = sbr.rel (0) target = $region5
    $region4: #{tpu_custom_call.1} parent=1 // pred_region
      _
    $region5: #{tpu_custom_call.1} parent=1 // pred_fallthru
      _
    // Predicated region
    $region6: #{tpu_custom_call.1} parent=1 // pred_check
      _
    $region7: #{tpu_custom_call.1} parent=1 // pred_check_branch
      %13 = sbr.rel (0) target = $region9
    $region8: #{tpu_custom_call.1} parent=1 // pred_region
      %s15 = ssub.s32 2048, 2048
      %16 = vsyncadd [#allocation3], %s15
      %s17 = sshll.u32 [#allocation2], 4
      %s18 = int_to_ptr.vmem [resolvable:$true] %s17
      %23 = dma.hbm_to_vmem [thread:$0]  %s1, 2048, %s18, [#allocation3], 512, 512, 32
    $region9: #{tpu_custom_call.1} parent=1 // pred_fallthru
      _
    // Predicated region
    $region10: #{tpu_custom_call.1} parent=1 // pred_check
      _
    $region11: #{tpu_custom_call.1} parent=1 // pred_check_branch
      %25 = sbr.rel (0) target = $region13
    $region12: #{tpu_custom_call.1} parent=1 // pred_region
      _
    $region13: #{tpu_custom_call.1} parent=1 // pred_fallthru
      _
    // Predicated region
    $region14: #{tpu_custom_call.1} parent=1 // pred_check
      _
    $region15: #{tpu_custom_call.1} parent=1 // pred_check_branch
      %27 = sbr.rel (0) target = $region17
    $region16: #{tpu_custom_call.1} parent=1 // pred_region
      %28 = dma.done [#allocation3], 2048
    $region17: #{tpu_custom_call.1} parent=1 // pred_fallthru
      _
    %v29 = vld [vmem:[%s0] sm:$0xff]
    %v30 = vld [vmem:[%s0 + $0x8] sm:$0xff]
    %v31 = vld [vmem:[#allocation2] sm:$0xff]
    %v32 = vld [vmem:[#allocation2 + $0x20] sm:$0xff]
    %v33 = vld [vmem:[#allocation2 + $0x40] sm:$0xff]
    %v34 = vld [vmem:[#allocation2 + $0x60] sm:$0xff]
    %v35 = vld [vmem:[#allocation2 + $0x8] sm:$0xff]
    %v36 = vld [vmem:[#allocation2 + $0x28] sm:$0xff]
    %v37 = vld [vmem:[#allocation2 + $0x48] sm:$0xff]
    %v38 = vld [vmem:[#allocation2 + $0x68] sm:$0xff]
    %v39 = vld [vmem:[#allocation2 + $0x10] sm:$0xff]
    %v40 = vld [vmem:[#allocation2 + $0x30] sm:$0xff]
    %v41 = vld [vmem:[#allocation2 + $0x50] sm:$0xff]
    %v42 = vld [vmem:[#allocation2 + $0x70] sm:$0xff]
    %v43 = vld [vmem:[#allocation2 + $0x18] ss:$0 sm:$0xff]
    %v44 = vld [vmem:[#allocation2 + $0x19] ss:$0 sm:$0xff]
    %v45 = vld [vmem:[#allocation2 + $0x1a] ss:$0 sm:$0xff]
    %v46 = vld [vmem:[#allocation2 + $0x1b] ss:$0 sm:$0xff]
    %v47 = vld [vmem:[#allocation2 + $0x1c] ss:$0 sm:$0xff]
    %v48 = vld [vmem:[#allocation2 + $0x1d] ss:$0 sm:$0xff]
    %v49 = vld [vmem:[#allocation2 + $0x1e] ss:$0 sm:$0xff]
    %v50 = vld [vmem:[#allocation2 + $0x1f] ss:$0 sm:$0xff]
    %vm51 = vcmask 261120
    %v53 = vsel %vm51, %v29, 0
    %v56 = vsel %vm51, %v30, 0
    %58 = vmatprep.subr.mxu0 0.0
    %59 = vmatpush1.msra.mxu0 %v31
    %60 = vmatprep.subr.mxu0 0.0
    %61 = vmatpush1.msra.mxu0 %v32
    %62 = vmatprep.subr.mxu0 0.0
    %63 = vmatpush1.msra.mxu0 %v33
    %64 = vmatprep.subr.mxu0 0.0
    %65 = vmatpush1.msra.mxu0 %v34
    %66 = vmatprep.subr.mxu0 0.0
    %67 = vmatpush1.msra.mxu0 0.0
    %68 = vmatprep.subr.mxu0 0.0
    %69 = vmatpush1.msra.mxu0 0.0
    %70 = vmatprep.subr.mxu0 0.0
    %71 = vmatpush1.msra.mxu0 0.0
    %72 = vmatprep.subr.mxu0 0.0
    %73 = vmatpush1.msra.mxu0 0.0
    %74 = vmatprep.subr.mxu0 0.0
    %75 = vmatpush1.msra.mxu0 0.0
    %76 = vmatprep.subr.mxu0 0.0
    %77 = vmatpush1.msra.mxu0 0.0
    %78 = vmatprep.subr.mxu0 0.0
    %79 = vmatpush1.msra.mxu0 0.0
    %80 = vmatprep.subr.mxu0 0.0
    %81 = vmatpush1.msra.mxu0 0.0
    %82 = vmatprep.subr.mxu0 0.0
    %83 = vmatpush1.msra.mxu0 0.0
    %84 = vmatprep.subr.mxu0 0.0
    %85 = vmatpush1.msra.mxu0 0.0
    %86 = vmatprep.subr.mxu0 0.0
    %87 = vmatpush1.msra.mxu0 0.0
    %88 = vmatprep.subr.mxu0 0.0
    %89 = vmatpush1.msra.mxu0 0.0
    %90 = vmatprep.subr.mxu0 0.0
    %91 = vmatpush1.msra.mxu0 0.0
    %92 = vmatprep.subr.mxu0 0.0
    %93 = vmatpush1.msra.mxu0 0.0
    %94 = vmatprep.subr.mxu0 0.0
    %95 = vmatpush1.msra.mxu0 0.0
    %96 = vmatprep.subr.mxu0 0.0
    %97 = vmatpush1.msra.mxu0 0.0
    %98 = vmatprep.subr.mxu0 0.0
    %99 = vmatpush1.msra.mxu0 0.0
    %100 = vmatprep.subr.mxu0 0.0
    %101 = vmatpush1.msra.mxu0 0.0
    %102 = vmatprep.subr.mxu0 0.0
    %103 = vmatpush1.msra.mxu0 0.0
    %104 = vmatprep.subr.mxu0 0.0
    %105 = vmatpush1.msra.mxu0 0.0
    %106 = vmatprep.subr.mxu0 0.0
    %107 = vmatpush1.msra.mxu0 0.0
    %108 = vmatprep.subr.mxu0 0.0
    %109 = vmatpush1.msra.mxu0 0.0
    %110 = vmatprep.subr.mxu0 0.0
    %111 = vmatpush1.msra.mxu0 0.0
    %112 = vmatprep.subr.mxu0 0.0
    %113 = vmatpush1.msra.mxu0 0.0
    %114 = vmatprep.subr.mxu0 0.0
    %115 = vmatpush1.msra.mxu0 0.0
    %116 = vmatprep.subr.mxu0 0.0
    %117 = vmatpush1.msra.mxu0 0.0
    %118 = vmatprep.subr.mxu0 0.0
    %119 = vmatpush1.msra.mxu0 0.0
    %120 = vmatprep.subr.mxu0 0.0
    %121 = vmatpush1.msra.mxu0 0.0
    %122 = vmatprep.mubr.f32.mxu0 0.0
    %123 = vmatmul.mubr.f32.gmra.mrb[0].mxu0 %v53
    %v124 = vpop.f32.mrb[0].mxu0
    %v125 = vadd.f32 %v43, %v124
    %v126 = vpop.f32.mrb[0].mxu0
    %127 = vmatprep.mubr.f32.mxu0 0.0
    %128 = vmatmul.mubr.f32.gmra.mrb[0].mxu0 %v56
    %v129 = vpop.f32.mrb[0].mxu0
    %v130 = vadd.f32 %v43, %v129
    %v131 = vpop.f32.mrb[0].mxu0
    %132 = vdwg.mxu0
    %135 = vrot.lane.b32.xlu0 %v125, 120
    %v136 = vpop.permute.xlu0 %135
    %137 = vrot.lane.b32.xlu0 %v130, 120
    %v138 = vpop.permute.xlu0 %137
    %139 = vrot.lane.b32.xlu0 %v125, 112
    %v140 = vpop.permute.xlu0 %139
    %141 = vrot.lane.b32.xlu0 %v130, 112
    %v142 = vpop.permute.xlu0 %141
    %143 = vrot.lane.b32.xlu0 %v125, 104
    %v144 = vpop.permute.xlu0 %143
    %145 = vrot.lane.b32.xlu0 %v130, 104
    %v146 = vpop.permute.xlu0 %145
    %147 = vrot.lane.b32.xlu0 %v125, 96
    %v148 = vpop.permute.xlu0 %147
    %vm149 = vcmask 64512
    %v150 = vsel %vm149, %v125, 0
    %v152 = vsel %vm149, %v148, 0
    %154 = vmatprep.subr.mxu0 0.0
    %155 = vmatpush1.xpose.msra.mxu0 %v152
    %156 = vmatprep.subr.mxu0 0.0
    %157 = vmatpush1.xpose.msra.mxu0 0.0
    %158 = vmatprep.subr.mxu0 0.0
    %159 = vmatpush1.xpose.msra.mxu0 0.0
    %160 = vmatprep.subr.mxu0 0.0
    %161 = vmatpush1.xpose.msra.mxu0 0.0
    %162 = vmatprep.subr.mxu0 0.0
    %163 = vmatpush1.xpose.msra.mxu0 0.0
    %164 = vmatprep.subr.mxu0 0.0
    %165 = vmatpush1.xpose.msra.mxu0 0.0
    %166 = vmatprep.subr.mxu0 0.0
    %167 = vmatpush1.xpose.msra.mxu0 0.0
    %168 = vmatprep.subr.mxu0 0.0
    %169 = vmatpush1.xpose.msra.mxu0 0.0
    %170 = vmatprep.subr.mxu0 0.0
    %171 = vmatpush1.xpose.msra.mxu0 0.0
    %172 = vmatprep.subr.mxu0 0.0
    %173 = vmatpush1.xpose.msra.mxu0 0.0
    %174 = vmatprep.subr.mxu0 0.0
    %175 = vmatpush1.xpose.msra.mxu0 0.0
    %176 = vmatprep.subr.mxu0 0.0
    %177 = vmatpush1.xpose.msra.mxu0 0.0
    %178 = vmatprep.subr.mxu0 0.0
    %179 = vmatpush1.xpose.msra.mxu0 0.0
    %180 = vmatprep.subr.mxu0 0.0
    %181 = vmatpush1.xpose.msra.mxu0 0.0
    %182 = vmatprep.subr.mxu0 0.0
    %183 = vmatpush1.xpose.msra.mxu0 0.0
    %184 = vmatprep.subr.mxu0 0.0
    %185 = vmatpush1.xpose.msra.mxu0 0.0
    %186 = vmatprep.subr.mxu0 0.0
    %187 = vmatpush1.xpose.msra.mxu0 0.0
    %188 = vmatprep.subr.mxu0 0.0
    %189 = vmatpush1.xpose.msra.mxu0 0.0
    %190 = vmatprep.subr.mxu0 0.0
    %191 = vmatpush1.xpose.msra.mxu0 0.0
    %192 = vmatprep.subr.mxu0 0.0
    %193 = vmatpush1.xpose.msra.mxu0 0.0
    %194 = vmatprep.subr.mxu0 0.0
    %195 = vmatpush1.xpose.msra.mxu0 0.0
    %196 = vmatprep.subr.mxu0 0.0
    %197 = vmatpush1.xpose.msra.mxu0 0.0
    %198 = vmatprep.subr.mxu0 0.0
    %199 = vmatpush1.xpose.msra.mxu0 0.0
    %200 = vmatprep.subr.mxu0 0.0
    %201 = vmatpush1.xpose.msra.mxu0 0.0
    %202 = vmatprep.subr.mxu0 0.0
    %203 = vmatpush1.xpose.msra.mxu0 0.0
    %204 = vmatprep.subr.mxu0 0.0
    %205 = vmatpush1.xpose.msra.mxu0 0.0
    %206 = vmatprep.subr.mxu0 0.0
    %207 = vmatpush1.xpose.msra.mxu0 0.0
    %208 = vmatprep.subr.mxu0 0.0
    %209 = vmatpush1.xpose.msra.mxu0 0.0
    %210 = vmatprep.subr.mxu0 0.0
    %211 = vmatpush1.xpose.msra.mxu0 0.0
    %212 = vmatprep.subr.mxu0 0.0
    %213 = vmatpush1.xpose.msra.mxu0 0.0
    %214 = vmatprep.subr.mxu0 0.0
    %215 = vmatpush1.xpose.msra.mxu0 0.0
    %216 = vmatprep.subr.mxu0 0.0
    %217 = vmatpush1.xpose.msra.mxu0 0.0
    %218 = vmatprep.mubr.f32.mxu0 0.0
    %219 = vmatmul.mubr.f32.gmra.mrb[0].mxu0 %v150
    %v220 = vpop.f32.mrb[0].mxu0
    %v221 = vadd.f32 0.0, %v220
    %v222 = vpop.f32.mrb[0].mxu0
    %223 = vdwg.mxu0
    %224 = vrot.lane.b32.xlu0 %v130, 96
    %v225 = vpop.permute.xlu0 %224
    %v226 = vsel %vm149, %v130, 0
    %v228 = vsel %vm149, %v225, 0
    %230 = vmatprep.subr.mxu0 0.0
    %231 = vmatpush1.xpose.msra.mxu0 %v228
    %232 = vmatprep.subr.mxu0 0.0
    %233 = vmatpush1.xpose.msra.mxu0 0.0
    %234 = vmatprep.subr.mxu0 0.0
    %235 = vmatpush1.xpose.msra.mxu0 0.0
    %236 = vmatprep.subr.mxu0 0.0
    %237 = vmatpush1.xpose.msra.mxu0 0.0
    %238 = vmatprep.subr.mxu0 0.0
    %239 = vmatpush1.xpose.msra.mxu0 0.0
    %240 = vmatprep.subr.mxu0 0.0
    %241 = vmatpush1.xpose.msra.mxu0 0.0
    %242 = vmatprep.subr.mxu0 0.0
    %243 = vmatpush1.xpose.msra.mxu0 0.0
    %244 = vmatprep.subr.mxu0 0.0
    %245 = vmatpush1.xpose.msra.mxu0 0.0
    %246 = vmatprep.subr.mxu0 0.0
    %247 = vmatpush1.xpose.msra.mxu0 0.0
    %248 = vmatprep.subr.mxu0 0.0
    %249 = vmatpush1.xpose.msra.mxu0 0.0
    %250 = vmatprep.subr.mxu0 0.0
    %251 = vmatpush1.xpose.msra.mxu0 0.0
    %252 = vmatprep.subr.mxu0 0.0
    %253 = vmatpush1.xpose.msra.mxu0 0.0
    %254 = vmatprep.subr.mxu0 0.0
    %255 = vmatpush1.xpose.msra.mxu0 0.0
    %256 = vmatprep.subr.mxu0 0.0
    %257 = vmatpush1.xpose.msra.mxu0 0.0
    %258 = vmatprep.subr.mxu0 0.0
    %259 = vmatpush1.xpose.msra.mxu0 0.0
    %260 = vmatprep.subr.mxu0 0.0
    %261 = vmatpush1.xpose.msra.mxu0 0.0
    %262 = vmatprep.subr.mxu0 0.0
    %263 = vmatpush1.xpose.msra.mxu0 0.0
    %264 = vmatprep.subr.mxu0 0.0
    %265 = vmatpush1.xpose.msra.mxu0 0.0
    %266 = vmatprep.subr.mxu0 0.0
    %267 = vmatpush1.xpose.msra.mxu0 0.0
    %268 = vmatprep.subr.mxu0 0.0
    %269 = vmatpush1.xpose.msra.mxu0 0.0
    %270 = vmatprep.subr.mxu0 0.0
    %271 = vmatpush1.xpose.msra.mxu0 0.0
    %272 = vmatprep.subr.mxu0 0.0
    %273 = vmatpush1.xpose.msra.mxu0 0.0
    %274 = vmatprep.subr.mxu0 0.0
    %275 = vmatpush1.xpose.msra.mxu0 0.0
    %276 = vmatprep.subr.mxu0 0.0
    %277 = vmatpush1.xpose.msra.mxu0 0.0
    %278 = vmatprep.subr.mxu0 0.0
    %279 = vmatpush1.xpose.msra.mxu0 0.0
    %280 = vmatprep.subr.mxu0 0.0
    %281 = vmatpush1.xpose.msra.mxu0 0.0
    %282 = vmatprep.subr.mxu0 0.0
    %283 = vmatpush1.xpose.msra.mxu0 0.0
    %284 = vmatprep.subr.mxu0 0.0
    %285 = vmatpush1.xpose.msra.mxu0 0.0
    %286 = vmatprep.subr.mxu0 0.0
    %287 = vmatpush1.xpose.msra.mxu0 0.0
    %288 = vmatprep.subr.mxu0 0.0
    %289 = vmatpush1.xpose.msra.mxu0 0.0
    %290 = vmatprep.subr.mxu0 0.0
    %291 = vmatpush1.xpose.msra.mxu0 0.0
    %292 = vmatprep.subr.mxu0 0.0
    %293 = vmatpush1.xpose.msra.mxu0 0.0
    %294 = vmatprep.mubr.f32.mxu0 0.0
    %295 = vmatmul.mubr.f32.gmra.mrb[0].mxu0 %v226
    %v296 = vpop.f32.mrb[0].mxu0
    %v297 = vadd.f32 0.0, %v296
    %v298 = vpop.f32.mrb[0].mxu0
    %299 = vdwg.mxu0
    %300 = vrot.lane.b32.xlu0 %v136, 96
    %v301 = vpop.permute.xlu0 %300
    %v302 = vsel %vm149, %v136, 0
    %v304 = vsel %vm149, %v301, 0
    %306 = vmatprep.subr.mxu0 0.0
    %307 = vmatpush1.xpose.msra.mxu0 %v304
    %308 = vmatprep.subr.mxu0 0.0
    %309 = vmatpush1.xpose.msra.mxu0 0.0
    %310 = vmatprep.subr.mxu0 0.0
    %311 = vmatpush1.xpose.msra.mxu0 0.0
    %312 = vmatprep.subr.mxu0 0.0
    %313 = vmatpush1.xpose.msra.mxu0 0.0
    %314 = vmatprep.subr.mxu0 0.0
    %315 = vmatpush1.xpose.msra.mxu0 0.0
    %316 = vmatprep.subr.mxu0 0.0
    %317 = vmatpush1.xpose.msra.mxu0 0.0
    %318 = vmatprep.subr.mxu0 0.0
    %319 = vmatpush1.xpose.msra.mxu0 0.0
    %320 = vmatprep.subr.mxu0 0.0
    %321 = vmatpush1.xpose.msra.mxu0 0.0
    %322 = vmatprep.subr.mxu0 0.0
    %323 = vmatpush1.xpose.msra.mxu0 0.0
    %324 = vmatprep.subr.mxu0 0.0
    %325 = vmatpush1.xpose.msra.mxu0 0.0
    %326 = vmatprep.subr.mxu0 0.0
    %327 = vmatpush1.xpose.msra.mxu0 0.0
    %328 = vmatprep.subr.mxu0 0.0
    %329 = vmatpush1.xpose.msra.mxu0 0.0
    %330 = vmatprep.subr.mxu0 0.0
    %331 = vmatpush1.xpose.msra.mxu0 0.0
    %332 = vmatprep.subr.mxu0 0.0
    %333 = vmatpush1.xpose.msra.mxu0 0.0
    %334 = vmatprep.subr.mxu0 0.0
    %335 = vmatpush1.xpose.msra.mxu0 0.0
    %336 = vmatprep.subr.mxu0 0.0
    %337 = vmatpush1.xpose.msra.mxu0 0.0
    %338 = vmatprep.subr.mxu0 0.0
    %339 = vmatpush1.xpose.msra.mxu0 0.0
    %340 = vmatprep.subr.mxu0 0.0
    %341 = vmatpush1.xpose.msra.mxu0 0.0
    %342 = vmatprep.subr.mxu0 0.0
    %343 = vmatpush1.xpose.msra.mxu0 0.0
    %344 = vmatprep.subr.mxu0 0.0
    %345 = vmatpush1.xpose.msra.mxu0 0.0
    %346 = vmatprep.subr.mxu0 0.0
    %347 = vmatpush1.xpose.msra.mxu0 0.0
    %348 = vmatprep.subr.mxu0 0.0
    %349 = vmatpush1.xpose.msra.mxu0 0.0
    %350 = vmatprep.subr.mxu0 0.0
    %351 = vmatpush1.xpose.msra.mxu0 0.0
    %352 = vmatprep.subr.mxu0 0.0
    %353 = vmatpush1.xpose.msra.mxu0 0.0
    %354 = vmatprep.subr.mxu0 0.0
    %355 = vmatpush1.xpose.msra.mxu0 0.0
    %356 = vmatprep.subr.mxu0 0.0
    %357 = vmatpush1.xpose.msra.mxu0 0.0
    %358 = vmatprep.subr.mxu0 0.0
    %359 = vmatpush1.xpose.msra.mxu0 0.0
    %360 = vmatprep.subr.mxu0 0.0
    %361 = vmatpush1.xpose.msra.mxu0 0.0
    %362 = vmatprep.subr.mxu0 0.0
    %363 = vmatpush1.xpose.msra.mxu0 0.0
    %364 = vmatprep.subr.mxu0 0.0
    %365 = vmatpush1.xpose.msra.mxu0 0.0
    %366 = vmatprep.subr.mxu0 0.0
    %367 = vmatpush1.xpose.msra.mxu0 0.0
    %368 = vmatprep.subr.mxu0 0.0
    %369 = vmatpush1.xpose.msra.mxu0 0.0
    %370 = vmatprep.mubr.f32.mxu0 0.0
    %371 = vmatmul.mubr.f32.gmra.mrb[0].mxu0 %v302
    %v372 = vpop.f32.mrb[0].mxu0
    %v373 = vadd.f32 0.0, %v372
    %v374 = vpop.f32.mrb[0].mxu0
    %375 = vdwg.mxu0
    %376 = vrot.lane.b32.xlu0 %v138, 96
    %v377 = vpop.permute.xlu0 %376
    %v378 = vsel %vm149, %v138, 0
    %v380 = vsel %vm149, %v377, 0
    %382 = vmatprep.subr.mxu0 0.0
    %383 = vmatpush1.xpose.msra.mxu0 %v380
    %384 = vmatprep.subr.mxu0 0.0
    %385 = vmatpush1.xpose.msra.mxu0 0.0
    %386 = vmatprep.subr.mxu0 0.0
    %387 = vmatpush1.xpose.msra.mxu0 0.0
    %388 = vmatprep.subr.mxu0 0.0
    %389 = vmatpush1.xpose.msra.mxu0 0.0
    %390 = vmatprep.subr.mxu0 0.0
    %391 = vmatpush1.xpose.msra.mxu0 0.0
    %392 = vmatprep.subr.mxu0 0.0
    %393 = vmatpush1.xpose.msra.mxu0 0.0
    %394 = vmatprep.subr.mxu0 0.0
    %395 = vmatpush1.xpose.msra.mxu0 0.0
    %396 = vmatprep.subr.mxu0 0.0
    %397 = vmatpush1.xpose.msra.mxu0 0.0
    %398 = vmatprep.subr.mxu0 0.0
    %399 = vmatpush1.xpose.msra.mxu0 0.0
    %400 = vmatprep.subr.mxu0 0.0
    %401 = vmatpush1.xpose.msra.mxu0 0.0
    %402 = vmatprep.subr.mxu0 0.0
    %403 = vmatpush1.xpose.msra.mxu0 0.0
    %404 = vmatprep.subr.mxu0 0.0
    %405 = vmatpush1.xpose.msra.mxu0 0.0
    %406 = vmatprep.subr.mxu0 0.0
    %407 = vmatpush1.xpose.msra.mxu0 0.0
    %408 = vmatprep.subr.mxu0 0.0
    %409 = vmatpush1.xpose.msra.mxu0 0.0
    %410 = vmatprep.subr.mxu0 0.0
    %411 = vmatpush1.xpose.msra.mxu0 0.0
    %412 = vmatprep.subr.mxu0 0.0
    %413 = vmatpush1.xpose.msra.mxu0 0.0
    %414 = vmatprep.subr.mxu0 0.0
    %415 = vmatpush1.xpose.msra.mxu0 0.0
    %416 = vmatprep.subr.mxu0 0.0
    %417 = vmatpush1.xpose.msra.mxu0 0.0
    %418 = vmatprep.subr.mxu0 0.0
    %419 = vmatpush1.xpose.msra.mxu0 0.0
    %420 = vmatprep.subr.mxu0 0.0
    %421 = vmatpush1.xpose.msra.mxu0 0.0
    %422 = vmatprep.subr.mxu0 0.0
    %423 = vmatpush1.xpose.msra.mxu0 0.0
    %424 = vmatprep.subr.mxu0 0.0
    %425 = vmatpush1.xpose.msra.mxu0 0.0
    %426 = vmatprep.subr.mxu0 0.0
    %427 = vmatpush1.xpose.msra.mxu0 0.0
    %428 = vmatprep.subr.mxu0 0.0
    %429 = vmatpush1.xpose.msra.mxu0 0.0
    %430 = vmatprep.subr.mxu0 0.0
    %431 = vmatpush1.xpose.msra.mxu0 0.0
    %432 = vmatprep.subr.mxu0 0.0
    %433 = vmatpush1.xpose.msra.mxu0 0.0
    %434 = vmatprep.subr.mxu0 0.0
    %435 = vmatpush1.xpose.msra.mxu0 0.0
    %436 = vmatprep.subr.mxu0 0.0
    %437 = vmatpush1.xpose.msra.mxu0 0.0
    %438 = vmatprep.subr.mxu0 0.0
    %439 = vmatpush1.xpose.msra.mxu0 0.0
    %440 = vmatprep.subr.mxu0 0.0
    %441 = vmatpush1.xpose.msra.mxu0 0.0
    %442 = vmatprep.subr.mxu0 0.0
    %443 = vmatpush1.xpose.msra.mxu0 0.0
    %444 = vmatprep.subr.mxu0 0.0
    %445 = vmatpush1.xpose.msra.mxu0 0.0
    %446 = vmatprep.mubr.f32.mxu0 0.0
    %447 = vmatmul.mubr.f32.gmra.mrb[0].mxu0 %v378
    %v448 = vpop.f32.mrb[0].mxu0
    %v449 = vadd.f32 0.0, %v448
    %v450 = vpop.f32.mrb[0].mxu0
    %451 = vdwg.mxu0
    %452 = vrot.lane.b32.xlu0 %v140, 96
    %v453 = vpop.permute.xlu0 %452
    %v454 = vsel %vm149, %v140, 0
    %v456 = vsel %vm149, %v453, 0
    %458 = vmatprep.subr.mxu0 0.0
    %459 = vmatpush1.xpose.msra.mxu0 %v456
    %460 = vmatprep.subr.mxu0 0.0
    %461 = vmatpush1.xpose.msra.mxu0 0.0
    %462 = vmatprep.subr.mxu0 0.0
    %463 = vmatpush1.xpose.msra.mxu0 0.0
    %464 = vmatprep.subr.mxu0 0.0
    %465 = vmatpush1.xpose.msra.mxu0 0.0
    %466 = vmatprep.subr.mxu0 0.0
    %467 = vmatpush1.xpose.msra.mxu0 0.0
    %468 = vmatprep.subr.mxu0 0.0
    %469 = vmatpush1.xpose.msra.mxu0 0.0
    %470 = vmatprep.subr.mxu0 0.0
    %471 = vmatpush1.xpose.msra.mxu0 0.0
    %472 = vmatprep.subr.mxu0 0.0
    %473 = vmatpush1.xpose.msra.mxu0 0.0
    %474 = vmatprep.subr.mxu0 0.0
    %475 = vmatpush1.xpose.msra.mxu0 0.0
    %476 = vmatprep.subr.mxu0 0.0
    %477 = vmatpush1.xpose.msra.mxu0 0.0
    %478 = vmatprep.subr.mxu0 0.0
    %479 = vmatpush1.xpose.msra.mxu0 0.0
    %480 = vmatprep.subr.mxu0 0.0
    %481 = vmatpush1.xpose.msra.mxu0 0.0
    %482 = vmatprep.subr.mxu0 0.0
    %483 = vmatpush1.xpose.msra.mxu0 0.0
    %484 = vmatprep.subr.mxu0 0.0
    %485 = vmatpush1.xpose.msra.mxu0 0.0
    %486 = vmatprep.subr.mxu0 0.0
    %487 = vmatpush1.xpose.msra.mxu0 0.0
    %488 = vmatprep.subr.mxu0 0.0
    %489 = vmatpush1.xpose.msra.mxu0 0.0
    %490 = vmatprep.subr.mxu0 0.0
    %491 = vmatpush1.xpose.msra.mxu0 0.0
    %492 = vmatprep.subr.mxu0 0.0
    %493 = vmatpush1.xpose.msra.mxu0 0.0
    %494 = vmatprep.subr.mxu0 0.0
    %495 = vmatpush1.xpose.msra.mxu0 0.0
    %496 = vmatprep.subr.mxu0 0.0
    %497 = vmatpush1.xpose.msra.mxu0 0.0
    %498 = vmatprep.subr.mxu0 0.0
    %499 = vmatpush1.xpose.msra.mxu0 0.0
    %500 = vmatprep.subr.mxu0 0.0
    %501 = vmatpush1.xpose.msra.mxu0 0.0
    %502 = vmatprep.subr.mxu0 0.0
    %503 = vmatpush1.xpose.msra.mxu0 0.0
    %504 = vmatprep.subr.mxu0 0.0
    %505 = vmatpush1.xpose.msra.mxu0 0.0
    %506 = vmatprep.subr.mxu0 0.0
    %507 = vmatpush1.xpose.msra.mxu0 0.0
    %508 = vmatprep.subr.mxu0 0.0
    %509 = vmatpush1.xpose.msra.mxu0 0.0
    %510 = vmatprep.subr.mxu0 0.0
    %511 = vmatpush1.xpose.msra.mxu0 0.0
    %512 = vmatprep.subr.mxu0 0.0
    %513 = vmatpush1.xpose.msra.mxu0 0.0
    %514 = vmatprep.subr.mxu0 0.0
    %515 = vmatpush1.xpose.msra.mxu0 0.0
    %516 = vmatprep.subr.mxu0 0.0
    %517 = vmatpush1.xpose.msra.mxu0 0.0
    %518 = vmatprep.subr.mxu0 0.0
    %519 = vmatpush1.xpose.msra.mxu0 0.0
    %520 = vmatprep.subr.mxu0 0.0
    %521 = vmatpush1.xpose.msra.mxu0 0.0
    %522 = vmatprep.mubr.f32.mxu0 0.0
    %523 = vmatmul.mubr.f32.gmra.mrb[0].mxu0 %v454
    %v524 = vpop.f32.mrb[0].mxu0
    %v525 = vadd.f32 0.0, %v524
    %v526 = vpop.f32.mrb[0].mxu0
    %527 = vdwg.mxu0
    %528 = vrot.lane.b32.xlu0 %v142, 96
    %v529 = vpop.permute.xlu0 %528
    %v530 = vsel %vm149, %v142, 0
    %v532 = vsel %vm149, %v529, 0
    %534 = vmatprep.subr.mxu0 0.0
    %535 = vmatpush1.xpose.msra.mxu0 %v532
    %536 = vmatprep.subr.mxu0 0.0
    %537 = vmatpush1.xpose.msra.mxu0 0.0
    %538 = vmatprep.subr.mxu0 0.0
    %539 = vmatpush1.xpose.msra.mxu0 0.0
    %540 = vmatprep.subr.mxu0 0.0
    %541 = vmatpush1.xpose.msra.mxu0 0.0
    %542 = vmatprep.subr.mxu0 0.0
    %543 = vmatpush1.xpose.msra.mxu0 0.0
    %544 = vmatprep.subr.mxu0 0.0
    %545 = vmatpush1.xpose.msra.mxu0 0.0
    %546 = vmatprep.subr.mxu0 0.0
    %547 = vmatpush1.xpose.msra.mxu0 0.0
    %548 = vmatprep.subr.mxu0 0.0
    %549 = vmatpush1.xpose.msra.mxu0 0.0
    %550 = vmatprep.subr.mxu0 0.0
    %551 = vmatpush1.xpose.msra.mxu0 0.0
    %552 = vmatprep.subr.mxu0 0.0
    %553 = vmatpush1.xpose.msra.mxu0 0.0
    %554 = vmatprep.subr.mxu0 0.0
    %555 = vmatpush1.xpose.msra.mxu0 0.0
    %556 = vmatprep.subr.mxu0 0.0
    %557 = vmatpush1.xpose.msra.mxu0 0.0
    %558 = vmatprep.subr.mxu0 0.0
    %559 = vmatpush1.xpose.msra.mxu0 0.0
    %560 = vmatprep.subr.mxu0 0.0
    %561 = vmatpush1.xpose.msra.mxu0 0.0
    %562 = vmatprep.subr.mxu0 0.0
    %563 = vmatpush1.xpose.msra.mxu0 0.0
    %564 = vmatprep.subr.mxu0 0.0
    %565 = vmatpush1.xpose.msra.mxu0 0.0
    %566 = vmatprep.subr.mxu0 0.0
    %567 = vmatpush1.xpose.msra.mxu0 0.0
    %568 = vmatprep.subr.mxu0 0.0
    %569 = vmatpush1.xpose.msra.mxu0 0.0
    %570 = vmatprep.subr.mxu0 0.0
    %571 = vmatpush1.xpose.msra.mxu0 0.0
    %572 = vmatprep.subr.mxu0 0.0
    %573 = vmatpush1.xpose.msra.mxu0 0.0
    %574 = vmatprep.subr.mxu0 0.0
    %575 = vmatpush1.xpose.msra.mxu0 0.0
    %576 = vmatprep.subr.mxu0 0.0
    %577 = vmatpush1.xpose.msra.mxu0 0.0
    %578 = vmatprep.subr.mxu0 0.0
    %579 = vmatpush1.xpose.msra.mxu0 0.0
    %580 = vmatprep.subr.mxu0 0.0
    %581 = vmatpush1.xpose.msra.mxu0 0.0
    %582 = vmatprep.subr.mxu0 0.0
    %583 = vmatpush1.xpose.msra.mxu0 0.0
    %584 = vmatprep.subr.mxu0 0.0
    %585 = vmatpush1.xpose.msra.mxu0 0.0
    %586 = vmatprep.subr.mxu0 0.0
    %587 = vmatpush1.xpose.msra.mxu0 0.0
    %588 = vmatprep.subr.mxu0 0.0
    %589 = vmatpush1.xpose.msra.mxu0 0.0
    %590 = vmatprep.subr.mxu0 0.0
    %591 = vmatpush1.xpose.msra.mxu0 0.0
    %592 = vmatprep.subr.mxu0 0.0
    %593 = vmatpush1.xpose.msra.mxu0 0.0
    %594 = vmatprep.subr.mxu0 0.0
    %595 = vmatpush1.xpose.msra.mxu0 0.0
    %596 = vmatprep.subr.mxu0 0.0
    %597 = vmatpush1.xpose.msra.mxu0 0.0
    %598 = vmatprep.mubr.f32.mxu0 0.0
    %599 = vmatmul.mubr.f32.gmra.mrb[0].mxu0 %v530
    %v600 = vpop.f32.mrb[0].mxu0
    %v601 = vadd.f32 0.0, %v600
    %v602 = vpop.f32.mrb[0].mxu0
    %603 = vdwg.mxu0
    %604 = vrot.lane.b32.xlu0 %v144, 96
    %v605 = vpop.permute.xlu0 %604
    %v606 = vsel %vm149, %v144, 0
    %v608 = vsel %vm149, %v605, 0
    %610 = vmatprep.subr.mxu0 0.0
    %611 = vmatpush1.xpose.msra.mxu0 %v608
    %612 = vmatprep.subr.mxu0 0.0
    %613 = vmatpush1.xpose.msra.mxu0 0.0
    %614 = vmatprep.subr.mxu0 0.0
    %615 = vmatpush1.xpose.msra.mxu0 0.0
    %616 = vmatprep.subr.mxu0 0.0
    %617 = vmatpush1.xpose.msra.mxu0 0.0
    %618 = vmatprep.subr.mxu0 0.0
    %619 = vmatpush1.xpose.msra.mxu0 0.0
    %620 = vmatprep.subr.mxu0 0.0
    %621 = vmatpush1.xpose.msra.mxu0 0.0
    %622 = vmatprep.subr.mxu0 0.0
    %623 = vmatpush1.xpose.msra.mxu0 0.0
    %624 = vmatprep.subr.mxu0 0.0
    %625 = vmatpush1.xpose.msra.mxu0 0.0
    %626 = vmatprep.subr.mxu0 0.0
    %627 = vmatpush1.xpose.msra.mxu0 0.0
    %628 = vmatprep.subr.mxu0 0.0
    %629 = vmatpush1.xpose.msra.mxu0 0.0
    %630 = vmatprep.subr.mxu0 0.0
    %631 = vmatpush1.xpose.msra.mxu0 0.0
    %632 = vmatprep.subr.mxu0 0.0
    %633 = vmatpush1.xpose.msra.mxu0 0.0
    %634 = vmatprep.subr.mxu0 0.0
    %635 = vmatpush1.xpose.msra.mxu0 0.0
    %636 = vmatprep.subr.mxu0 0.0
    %637 = vmatpush1.xpose.msra.mxu0 0.0
    %638 = vmatprep.subr.mxu0 0.0
    %639 = vmatpush1.xpose.msra.mxu0 0.0
    %640 = vmatprep.subr.mxu0 0.0
    %641 = vmatpush1.xpose.msra.mxu0 0.0
    %642 = vmatprep.subr.mxu0 0.0
    %643 = vmatpush1.xpose.msra.mxu0 0.0
    %644 = vmatprep.subr.mxu0 0.0
    %645 = vmatpush1.xpose.msra.mxu0 0.0
    %646 = vmatprep.subr.mxu0 0.0
    %647 = vmatpush1.xpose.msra.mxu0 0.0
    %648 = vmatprep.subr.mxu0 0.0
    %649 = vmatpush1.xpose.msra.mxu0 0.0
    %650 = vmatprep.subr.mxu0 0.0
    %651 = vmatpush1.xpose.msra.mxu0 0.0
    %652 = vmatprep.subr.mxu0 0.0
    %653 = vmatpush1.xpose.msra.mxu0 0.0
    %654 = vmatprep.subr.mxu0 0.0
    %655 = vmatpush1.xpose.msra.mxu0 0.0
    %656 = vmatprep.subr.mxu0 0.0
    %657 = vmatpush1.xpose.msra.mxu0 0.0
    %658 = vmatprep.subr.mxu0 0.0
    %659 = vmatpush1.xpose.msra.mxu0 0.0
    %660 = vmatprep.subr.mxu0 0.0
    %661 = vmatpush1.xpose.msra.mxu0 0.0
    %662 = vmatprep.subr.mxu0 0.0
    %663 = vmatpush1.xpose.msra.mxu0 0.0
    %664 = vmatprep.subr.mxu0 0.0
    %665 = vmatpush1.xpose.msra.mxu0 0.0
    %666 = vmatprep.subr.mxu0 0.0
    %667 = vmatpush1.xpose.msra.mxu0 0.0
    %668 = vmatprep.subr.mxu0 0.0
    %669 = vmatpush1.xpose.msra.mxu0 0.0
    %670 = vmatprep.subr.mxu0 0.0
    %671 = vmatpush1.xpose.msra.mxu0 0.0
    %672 = vmatprep.subr.mxu0 0.0
    %673 = vmatpush1.xpose.msra.mxu0 0.0
    %674 = vmatprep.mubr.f32.mxu0 0.0
    %675 = vmatmul.mubr.f32.gmra.mrb[0].mxu0 %v606
    %v676 = vpop.f32.mrb[0].mxu0
    %v677 = vadd.f32 0.0, %v676
    %v678 = vpop.f32.mrb[0].mxu0
    %679 = vdwg.mxu0
    %680 = vrot.lane.b32.xlu0 %v146, 96
    %v681 = vpop.permute.xlu0 %680
    %v682 = vsel %vm149, %v146, 0
    %v684 = vsel %vm149, %v681, 0
    %686 = vmatprep.subr.mxu0 0.0
    %687 = vmatpush1.xpose.msra.mxu0 %v684
    %688 = vmatprep.subr.mxu0 0.0
    %689 = vmatpush1.xpose.msra.mxu0 0.0
    %690 = vmatprep.subr.mxu0 0.0
    %691 = vmatpush1.xpose.msra.mxu0 0.0
    %692 = vmatprep.subr.mxu0 0.0
    %693 = vmatpush1.xpose.msra.mxu0 0.0
    %694 = vmatprep.subr.mxu0 0.0
    %695 = vmatpush1.xpose.msra.mxu0 0.0
    %696 = vmatprep.subr.mxu0 0.0
    %697 = vmatpush1.xpose.msra.mxu0 0.0
    %698 = vmatprep.subr.mxu0 0.0
    %699 = vmatpush1.xpose.msra.mxu0 0.0
    %700 = vmatprep.subr.mxu0 0.0
    %701 = vmatpush1.xpose.msra.mxu0 0.0
    %702 = vmatprep.subr.mxu0 0.0
    %703 = vmatpush1.xpose.msra.mxu0 0.0
    %704 = vmatprep.subr.mxu0 0.0
    %705 = vmatpush1.xpose.msra.mxu0 0.0
    %706 = vmatprep.subr.mxu0 0.0
    %707 = vmatpush1.xpose.msra.mxu0 0.0
    %708 = vmatprep.subr.mxu0 0.0
    %709 = vmatpush1.xpose.msra.mxu0 0.0
    %710 = vmatprep.subr.mxu0 0.0
    %711 = vmatpush1.xpose.msra.mxu0 0.0
    %712 = vmatprep.subr.mxu0 0.0
    %713 = vmatpush1.xpose.msra.mxu0 0.0
    %714 = vmatprep.subr.mxu0 0.0
    %715 = vmatpush1.xpose.msra.mxu0 0.0
    %716 = vmatprep.subr.mxu0 0.0
    %717 = vmatpush1.xpose.msra.mxu0 0.0
    %718 = vmatprep.subr.mxu0 0.0
    %719 = vmatpush1.xpose.msra.mxu0 0.0
    %720 = vmatprep.subr.mxu0 0.0
    %721 = vmatpush1.xpose.msra.mxu0 0.0
    %722 = vmatprep.subr.mxu0 0.0
    %723 = vmatpush1.xpose.msra.mxu0 0.0
    %724 = vmatprep.subr.mxu0 0.0
    %725 = vmatpush1.xpose.msra.mxu0 0.0
    %726 = vmatprep.subr.mxu0 0.0
    %727 = vmatpush1.xpose.msra.mxu0 0.0
    %728 = vmatprep.subr.mxu0 0.0
    %729 = vmatpush1.xpose.msra.mxu0 0.0
    %730 = vmatprep.subr.mxu0 0.0
    %731 = vmatpush1.xpose.msra.mxu0 0.0
    %732 = vmatprep.subr.mxu0 0.0
    %733 = vmatpush1.xpose.msra.mxu0 0.0
    %734 = vmatprep.subr.mxu0 0.0
    %735 = vmatpush1.xpose.msra.mxu0 0.0
    %736 = vmatprep.subr.mxu0 0.0
    %737 = vmatpush1.xpose.msra.mxu0 0.0
    %738 = vmatprep.subr.mxu0 0.0
    %739 = vmatpush1.xpose.msra.mxu0 0.0
    %740 = vmatprep.subr.mxu0 0.0
    %741 = vmatpush1.xpose.msra.mxu0 0.0
    %742 = vmatprep.subr.mxu0 0.0
    %743 = vmatpush1.xpose.msra.mxu0 0.0
    %744 = vmatprep.subr.mxu0 0.0
    %745 = vmatpush1.xpose.msra.mxu0 0.0
    %746 = vmatprep.subr.mxu0 0.0
    %747 = vmatpush1.xpose.msra.mxu0 0.0
    %748 = vmatprep.subr.mxu0 0.0
    %749 = vmatpush1.xpose.msra.mxu0 0.0
    %750 = vmatprep.mubr.f32.mxu0 0.0
    %751 = vmatmul.mubr.f32.gmra.mrb[0].mxu0 %v682
    %v752 = vpop.f32.mrb[0].mxu0
    %v753 = vadd.f32 0.0, %v752
    %v754 = vpop.f32.mrb[0].mxu0
    %755 = vdwg.mxu0
    %v756 = vsel %vm149, %v221, -inf
    %757 = vmax.xlane.f32.xlu0 %v756
    %v758 = vpop.xlane.xlu0 %757
    %v759 = vsel %vm149, %v297, -inf
    %760 = vmax.xlane.f32.xlu0 %v759
    %v761 = vpop.xlane.xlu0 %760
    %v762 = vsel %vm149, %v373, -inf
    %763 = vmax.xlane.f32.xlu0 %v762
    %v764 = vpop.xlane.xlu0 %763
    %v765 = vsel %vm149, %v449, -inf
    %766 = vmax.xlane.f32.xlu0 %v765
    %v767 = vpop.xlane.xlu0 %766
    %v768 = vsel %vm149, %v525, -inf
    %769 = vmax.xlane.f32.xlu0 %v768
    %v770 = vpop.xlane.xlu0 %769
    %v771 = vsel %vm149, %v601, -inf
    %772 = vmax.xlane.f32.xlu0 %v771
    %v773 = vpop.xlane.xlu0 %772
    %v774 = vsel %vm149, %v677, -inf
    %775 = vmax.xlane.f32.xlu0 %v774
    %v776 = vpop.xlane.xlu0 %775
    %v777 = vsel %vm149, %v753, -inf
    %778 = vmax.xlane.f32.xlu0 %v777
    %v779 = vpop.xlane.xlu0 %778
    %v780 = vsub.f32 %v221, %v758
    %v781 = vsub.f32 %v297, %v761
    %v782 = vsub.f32 %v373, %v764
    %v783 = vsub.f32 %v449, %v767
    %v784 = vsub.f32 %v525, %v770
    %v785 = vsub.f32 %v601, %v773
    %v786 = vsub.f32 %v677, %v776
    %v787 = vsub.f32 %v753, %v779
    %v788 = vmul.f32 %v780, 1.442695
    %v789 = vpow.pop %v788
    %v790 = vmul.f32 %v781, 1.442695
    %v791 = vpow.pop %v790
    %v792 = vmul.f32 %v782, 1.442695
    %v793 = vpow.pop %v792
    %v794 = vmul.f32 %v783, 1.442695
    %v795 = vpow.pop %v794
    %v796 = vmul.f32 %v784, 1.442695
    %v797 = vpow.pop %v796
    %v798 = vmul.f32 %v785, 1.442695
    %v799 = vpow.pop %v798
    %v800 = vmul.f32 %v786, 1.442695
    %v801 = vpow.pop %v800
    %v802 = vmul.f32 %v787, 1.442695
    %v803 = vpow.pop %v802
    %v804 = vsel %vm149, %v789, 0.0
    %805 = vadd.xlane.f32.xlu0 %v804
    %v806 = vpop.xlane.xlu0 %805
    %v807 = vsel %vm149, %v791, 0.0
    %808 = vadd.xlane.f32.xlu0 %v807
    %v809 = vpop.xlane.xlu0 %808
    %v810 = vsel %vm149, %v793, 0.0
    %811 = vadd.xlane.f32.xlu0 %v810
    %v812 = vpop.xlane.xlu0 %811
    %v813 = vsel %vm149, %v795, 0.0
    %814 = vadd.xlane.f32.xlu0 %v813
    %v815 = vpop.xlane.xlu0 %814
    %v816 = vsel %vm149, %v797, 0.0
    %817 = vadd.xlane.f32.xlu0 %v816
    %v818 = vpop.xlane.xlu0 %817
    %v819 = vsel %vm149, %v799, 0.0
    %820 = vadd.xlane.f32.xlu0 %v819
    %v821 = vpop.xlane.xlu0 %820
    %v822 = vsel %vm149, %v801, 0.0
    %823 = vadd.xlane.f32.xlu0 %v822
    %v824 = vpop.xlane.xlu0 %823
    %v825 = vsel %vm149, %v803, 0.0
    %826 = vadd.xlane.f32.xlu0 %v825
    %v827 = vpop.xlane.xlu0 %826
    %v828 = vrcp.pop %v806
    %v829 = vrcp.pop %v809
    %v830 = vrcp.pop %v812
    %v831 = vrcp.pop %v815
    %v832 = vrcp.pop %v818
    %v833 = vrcp.pop %v821
    %v834 = vrcp.pop %v824
    %v835 = vrcp.pop %v827
    %v836 = vmul.f32 %v806, %v828
    %v837 = vmul.f32 %v809, %v829
    %v838 = vmul.f32 %v812, %v830
    %v839 = vmul.f32 %v815, %v831
    %v840 = vmul.f32 %v818, %v832
    %v841 = vmul.f32 %v821, %v833
    %v842 = vmul.f32 %v824, %v834
    %v843 = vmul.f32 %v827, %v835
    %v844 = vsub.f32 2.0, %v836
    %v845 = vsub.f32 2.0, %v837
    %v846 = vsub.f32 2.0, %v838
    %v847 = vsub.f32 2.0, %v839
    %v848 = vsub.f32 2.0, %v840
    %v849 = vsub.f32 2.0, %v841
    %v850 = vsub.f32 2.0, %v842
    %v851 = vsub.f32 2.0, %v843
    %v852 = vmul.f32 %v828, %v844
    %v853 = vmul.f32 %v829, %v845
    %v854 = vmul.f32 %v830, %v846
    %v855 = vmul.f32 %v831, %v847
    %v856 = vmul.f32 %v832, %v848
    %v857 = vmul.f32 %v833, %v849
    %v858 = vmul.f32 %v834, %v850
    %v859 = vmul.f32 %v835, %v851
    %v860 = vmul.f32 %v789, %v852
    %v861 = vmul.f32 %v791, %v853
    %v862 = vmul.f32 %v793, %v854
    %v863 = vmul.f32 %v795, %v855
    %v864 = vmul.f32 %v797, %v856
    %v865 = vmul.f32 %v799, %v857
    %v866 = vmul.f32 %v801, %v858
    %v867 = vmul.f32 %v803, %v859
    %868 = vrot.lane.b32.xlu0 %v125, 64
    %v869 = vpop.permute.xlu0 %868
    %v872 = vsel %vm149, %v860, 0
    %874 = vmatprep.subr.mxu0 0.0
    %875 = vmatpush1.msra.mxu0 %v869
    %876 = vmatprep.subr.mxu0 0.0
    %877 = vmatpush1.msra.mxu0 0.0
    %878 = vmatprep.subr.mxu0 0.0
    %879 = vmatpush1.msra.mxu0 0.0
    %880 = vmatprep.subr.mxu0 0.0
    %881 = vmatpush1.msra.mxu0 0.0
    %882 = vmatprep.subr.mxu0 0.0
    %883 = vmatpush1.msra.mxu0 0.0
    %884 = vmatprep.subr.mxu0 0.0
    %885 = vmatpush1.msra.mxu0 0.0
    %886 = vmatprep.subr.mxu0 0.0
    %887 = vmatpush1.msra.mxu0 0.0
    %888 = vmatprep.subr.mxu0 0.0
    %889 = vmatpush1.msra.mxu0 0.0
    %890 = vmatprep.subr.mxu0 0.0
    %891 = vmatpush1.msra.mxu0 0.0
    %892 = vmatprep.subr.mxu0 0.0
    %893 = vmatpush1.msra.mxu0 0.0
    %894 = vmatprep.subr.mxu0 0.0
    %895 = vmatpush1.msra.mxu0 0.0
    %896 = vmatprep.subr.mxu0 0.0
    %897 = vmatpush1.msra.mxu0 0.0
    %898 = vmatprep.subr.mxu0 0.0
    %899 = vmatpush1.msra.mxu0 0.0
    %900 = vmatprep.subr.mxu0 0.0
    %901 = vmatpush1.msra.mxu0 0.0
    %902 = vmatprep.subr.mxu0 0.0
    %903 = vmatpush1.msra.mxu0 0.0
    %904 = vmatprep.subr.mxu0 0.0
    %905 = vmatpush1.msra.mxu0 0.0
    %906 = vmatprep.subr.mxu0 0.0
    %907 = vmatpush1.msra.mxu0 0.0
    %908 = vmatprep.subr.mxu0 0.0
    %909 = vmatpush1.msra.mxu0 0.0
    %910 = vmatprep.subr.mxu0 0.0
    %911 = vmatpush1.msra.mxu0 0.0
    %912 = vmatprep.subr.mxu0 0.0
    %913 = vmatpush1.msra.mxu0 0.0
    %914 = vmatprep.subr.mxu0 0.0
    %915 = vmatpush1.msra.mxu0 0.0
    %916 = vmatprep.subr.mxu0 0.0
    %917 = vmatpush1.msra.mxu0 0.0
    %918 = vmatprep.subr.mxu0 0.0
    %919 = vmatpush1.msra.mxu0 0.0
    %920 = vmatprep.subr.mxu0 0.0
    %921 = vmatpush1.msra.mxu0 0.0
    %922 = vmatprep.subr.mxu0 0.0
    %923 = vmatpush1.msra.mxu0 0.0
    %924 = vmatprep.subr.mxu0 0.0
    %925 = vmatpush1.msra.mxu0 0.0
    %926 = vmatprep.subr.mxu0 0.0
    %927 = vmatpush1.msra.mxu0 0.0
    %928 = vmatprep.subr.mxu0 0.0
    %929 = vmatpush1.msra.mxu0 0.0
    %930 = vmatprep.subr.mxu0 0.0
    %931 = vmatpush1.msra.mxu0 0.0
    %932 = vmatprep.subr.mxu0 0.0
    %933 = vmatpush1.msra.mxu0 0.0
    %934 = vmatprep.subr.mxu0 0.0
    %935 = vmatpush1.msra.mxu0 0.0
    %936 = vmatprep.subr.mxu0 0.0
    %937 = vmatpush1.msra.mxu0 0.0
    %938 = vmatprep.mubr.f32.mxu0 0.0
    %939 = vmatmul.mubr.f32.gmra.mrb[0].mxu0 %v872
    %v940 = vpop.f32.mrb[0].mxu0
    %v941 = vadd.f32 0.0, %v940
    %v942 = vpop.f32.mrb[0].mxu0
    %943 = vdwg.mxu0
    %944 = vrot.lane.b32.xlu0 %v130, 64
    %v945 = vpop.permute.xlu0 %944
    %v948 = vsel %vm149, %v861, 0
    %950 = vmatprep.subr.mxu0 0.0
    %951 = vmatpush1.msra.mxu0 %v945
    %952 = vmatprep.subr.mxu0 0.0
    %953 = vmatpush1.msra.mxu0 0.0
    %954 = vmatprep.subr.mxu0 0.0
    %955 = vmatpush1.msra.mxu0 0.0
    %956 = vmatprep.subr.mxu0 0.0
    %957 = vmatpush1.msra.mxu0 0.0
    %958 = vmatprep.subr.mxu0 0.0
    %959 = vmatpush1.msra.mxu0 0.0
    %960 = vmatprep.subr.mxu0 0.0
    %961 = vmatpush1.msra.mxu0 0.0
    %962 = vmatprep.subr.mxu0 0.0
    %963 = vmatpush1.msra.mxu0 0.0
    %964 = vmatprep.subr.mxu0 0.0
    %965 = vmatpush1.msra.mxu0 0.0
    %966 = vmatprep.subr.mxu0 0.0
    %967 = vmatpush1.msra.mxu0 0.0
    %968 = vmatprep.subr.mxu0 0.0
    %969 = vmatpush1.msra.mxu0 0.0
    %970 = vmatprep.subr.mxu0 0.0
    %971 = vmatpush1.msra.mxu0 0.0
    %972 = vmatprep.subr.mxu0 0.0
    %973 = vmatpush1.msra.mxu0 0.0
    %974 = vmatprep.subr.mxu0 0.0
    %975 = vmatpush1.msra.mxu0 0.0
    %976 = vmatprep.subr.mxu0 0.0
    %977 = vmatpush1.msra.mxu0 0.0
    %978 = vmatprep.subr.mxu0 0.0
    %979 = vmatpush1.msra.mxu0 0.0
    %980 = vmatprep.subr.mxu0 0.0
    %981 = vmatpush1.msra.mxu0 0.0
    %982 = vmatprep.subr.mxu0 0.0
    %983 = vmatpush1.msra.mxu0 0.0
    %984 = vmatprep.subr.mxu0 0.0
    %985 = vmatpush1.msra.mxu0 0.0
    %986 = vmatprep.subr.mxu0 0.0
    %987 = vmatpush1.msra.mxu0 0.0
    %988 = vmatprep.subr.mxu0 0.0
    %989 = vmatpush1.msra.mxu0 0.0
    %990 = vmatprep.subr.mxu0 0.0
    %991 = vmatpush1.msra.mxu0 0.0
    %992 = vmatprep.subr.mxu0 0.0
    %993 = vmatpush1.msra.mxu0 0.0
    %994 = vmatprep.subr.mxu0 0.0
    %995 = vmatpush1.msra.mxu0 0.0
    %996 = vmatprep.subr.mxu0 0.0
    %997 = vmatpush1.msra.mxu0 0.0
    %998 = vmatprep.subr.mxu0 0.0
    %999 = vmatpush1.msra.mxu0 0.0
    %1000 = vmatprep.subr.mxu0 0.0
    %1001 = vmatpush1.msra.mxu0 0.0
    %1002 = vmatprep.subr.mxu0 0.0
    %1003 = vmatpush1.msra.mxu0 0.0
    %1004 = vmatprep.subr.mxu0 0.0
    %1005 = vmatpush1.msra.mxu0 0.0
    %1006 = vmatprep.subr.mxu0 0.0
    %1007 = vmatpush1.msra.mxu0 0.0
    %1008 = vmatprep.subr.mxu0 0.0
    %1009 = vmatpush1.msra.mxu0 0.0
    %1010 = vmatprep.subr.mxu0 0.0
    %1011 = vmatpush1.msra.mxu0 0.0
    %1012 = vmatprep.subr.mxu0 0.0
    %1013 = vmatpush1.msra.mxu0 0.0
    %1014 = vmatprep.mubr.f32.mxu0 0.0
    %1015 = vmatmul.mubr.f32.gmra.mrb[0].mxu0 %v948
    %v1016 = vpop.f32.mrb[0].mxu0
    %v1017 = vadd.f32 0.0, %v1016
    %v1018 = vpop.f32.mrb[0].mxu0
    %1019 = vdwg.mxu0
    %1020 = vrot.lane.b32.xlu0 %v136, 64
    %v1021 = vpop.permute.xlu0 %1020
    %v1024 = vsel %vm149, %v862, 0
    %1026 = vmatprep.subr.mxu0 0.0
    %1027 = vmatpush1.msra.mxu0 %v1021
    %1028 = vmatprep.subr.mxu0 0.0
    %1029 = vmatpush1.msra.mxu0 0.0
    %1030 = vmatprep.subr.mxu0 0.0
    %1031 = vmatpush1.msra.mxu0 0.0
    %1032 = vmatprep.subr.mxu0 0.0
    %1033 = vmatpush1.msra.mxu0 0.0
    %1034 = vmatprep.subr.mxu0 0.0
    %1035 = vmatpush1.msra.mxu0 0.0
    %1036 = vmatprep.subr.mxu0 0.0
    %1037 = vmatpush1.msra.mxu0 0.0
    %1038 = vmatprep.subr.mxu0 0.0
    %1039 = vmatpush1.msra.mxu0 0.0
    %1040 = vmatprep.subr.mxu0 0.0
    %1041 = vmatpush1.msra.mxu0 0.0
    %1042 = vmatprep.subr.mxu0 0.0
    %1043 = vmatpush1.msra.mxu0 0.0
    %1044 = vmatprep.subr.mxu0 0.0
    %1045 = vmatpush1.msra.mxu0 0.0
    %1046 = vmatprep.subr.mxu0 0.0
    %1047 = vmatpush1.msra.mxu0 0.0
    %1048 = vmatprep.subr.mxu0 0.0
    %1049 = vmatpush1.msra.mxu0 0.0
    %1050 = vmatprep.subr.mxu0 0.0
    %1051 = vmatpush1.msra.mxu0 0.0
    %1052 = vmatprep.subr.mxu0 0.0
    %1053 = vmatpush1.msra.mxu0 0.0
    %1054 = vmatprep.subr.mxu0 0.0
    %1055 = vmatpush1.msra.mxu0 0.0
    %1056 = vmatprep.subr.mxu0 0.0
    %1057 = vmatpush1.msra.mxu0 0.0
    %1058 = vmatprep.subr.mxu0 0.0
    %1059 = vmatpush1.msra.mxu0 0.0
    %1060 = vmatprep.subr.mxu0 0.0
    %1061 = vmatpush1.msra.mxu0 0.0
    %1062 = vmatprep.subr.mxu0 0.0
    %1063 = vmatpush1.msra.mxu0 0.0
    %1064 = vmatprep.subr.mxu0 0.0
    %1065 = vmatpush1.msra.mxu0 0.0
    %1066 = vmatprep.subr.mxu0 0.0
    %1067 = vmatpush1.msra.mxu0 0.0
    %1068 = vmatprep.subr.mxu0 0.0
    %1069 = vmatpush1.msra.mxu0 0.0
    %1070 = vmatprep.subr.mxu0 0.0
    %1071 = vmatpush1.msra.mxu0 0.0
    %1072 = vmatprep.subr.mxu0 0.0
    %1073 = vmatpush1.msra.mxu0 0.0
    %1074 = vmatprep.subr.mxu0 0.0
    %1075 = vmatpush1.msra.mxu0 0.0
    %1076 = vmatprep.subr.mxu0 0.0
    %1077 = vmatpush1.msra.mxu0 0.0
    %1078 = vmatprep.subr.mxu0 0.0
    %1079 = vmatpush1.msra.mxu0 0.0
    %1080 = vmatprep.subr.mxu0 0.0
    %1081 = vmatpush1.msra.mxu0 0.0
    %1082 = vmatprep.subr.mxu0 0.0
    %1083 = vmatpush1.msra.mxu0 0.0
    %1084 = vmatprep.subr.mxu0 0.0
    %1085 = vmatpush1.msra.mxu0 0.0
    %1086 = vmatprep.subr.mxu0 0.0
    %1087 = vmatpush1.msra.mxu0 0.0
    %1088 = vmatprep.subr.mxu0 0.0
    %1089 = vmatpush1.msra.mxu0 0.0
    %1090 = vmatprep.mubr.f32.mxu0 0.0
    %1091 = vmatmul.mubr.f32.gmra.mrb[0].mxu0 %v1024
    %v1092 = vpop.f32.mrb[0].mxu0
    %v1093 = vadd.f32 0.0, %v1092
    %v1094 = vpop.f32.mrb[0].mxu0
    %1095 = vdwg.mxu0
    %1096 = vrot.lane.b32.xlu0 %v138, 64
    %v1097 = vpop.permute.xlu0 %1096
    %v1100 = vsel %vm149, %v863, 0
    %1102 = vmatprep.subr.mxu0 0.0
    %1103 = vmatpush1.msra.mxu0 %v1097
    %1104 = vmatprep.subr.mxu0 0.0
    %1105 = vmatpush1.msra.mxu0 0.0
    %1106 = vmatprep.subr.mxu0 0.0
    %1107 = vmatpush1.msra.mxu0 0.0
    %1108 = vmatprep.subr.mxu0 0.0
    %1109 = vmatpush1.msra.mxu0 0.0
    %1110 = vmatprep.subr.mxu0 0.0
    %1111 = vmatpush1.msra.mxu0 0.0
    %1112 = vmatprep.subr.mxu0 0.0
    %1113 = vmatpush1.msra.mxu0 0.0
    %1114 = vmatprep.subr.mxu0 0.0
    %1115 = vmatpush1.msra.mxu0 0.0
    %1116 = vmatprep.subr.mxu0 0.0
    %1117 = vmatpush1.msra.mxu0 0.0
    %1118 = vmatprep.subr.mxu0 0.0
    %1119 = vmatpush1.msra.mxu0 0.0
    %1120 = vmatprep.subr.mxu0 0.0
    %1121 = vmatpush1.msra.mxu0 0.0
    %1122 = vmatprep.subr.mxu0 0.0
    %1123 = vmatpush1.msra.mxu0 0.0
    %1124 = vmatprep.subr.mxu0 0.0
    %1125 = vmatpush1.msra.mxu0 0.0
    %1126 = vmatprep.subr.mxu0 0.0
    %1127 = vmatpush1.msra.mxu0 0.0
    %1128 = vmatprep.subr.mxu0 0.0
    %1129 = vmatpush1.msra.mxu0 0.0
    %1130 = vmatprep.subr.mxu0 0.0
    %1131 = vmatpush1.msra.mxu0 0.0
    %1132 = vmatprep.subr.mxu0 0.0
    %1133 = vmatpush1.msra.mxu0 0.0
    %1134 = vmatprep.subr.mxu0 0.0
    %1135 = vmatpush1.msra.mxu0 0.0
    %1136 = vmatprep.subr.mxu0 0.0
    %1137 = vmatpush1.msra.mxu0 0.0
    %1138 = vmatprep.subr.mxu0 0.0
    %1139 = vmatpush1.msra.mxu0 0.0
    %1140 = vmatprep.subr.mxu0 0.0
    %1141 = vmatpush1.msra.mxu0 0.0
    %1142 = vmatprep.subr.mxu0 0.0
    %1143 = vmatpush1.msra.mxu0 0.0
    %1144 = vmatprep.subr.mxu0 0.0
    %1145 = vmatpush1.msra.mxu0 0.0
    %1146 = vmatprep.subr.mxu0 0.0
    %1147 = vmatpush1.msra.mxu0 0.0
    %1148 = vmatprep.subr.mxu0 0.0
    %1149 = vmatpush1.msra.mxu0 0.0
    %1150 = vmatprep.subr.mxu0 0.0
    %1151 = vmatpush1.msra.mxu0 0.0
    %1152 = vmatprep.subr.mxu0 0.0
    %1153 = vmatpush1.msra.mxu0 0.0
    %1154 = vmatprep.subr.mxu0 0.0
    %1155 = vmatpush1.msra.mxu0 0.0
    %1156 = vmatprep.subr.mxu0 0.0
    %1157 = vmatpush1.msra.mxu0 0.0
    %1158 = vmatprep.subr.mxu0 0.0
    %1159 = vmatpush1.msra.mxu0 0.0
    %1160 = vmatprep.subr.mxu0 0.0
    %1161 = vmatpush1.msra.mxu0 0.0
    %1162 = vmatprep.subr.mxu0 0.0
    %1163 = vmatpush1.msra.mxu0 0.0
    %1164 = vmatprep.subr.mxu0 0.0
    %1165 = vmatpush1.msra.mxu0 0.0
    %1166 = vmatprep.mubr.f32.mxu0 0.0
    %1167 = vmatmul.mubr.f32.gmra.mrb[0].mxu0 %v1100
    %v1168 = vpop.f32.mrb[0].mxu0
    %v1169 = vadd.f32 0.0, %v1168
    %v1170 = vpop.f32.mrb[0].mxu0
    %1171 = vdwg.mxu0
    %1172 = vrot.lane.b32.xlu0 %v140, 64
    %v1173 = vpop.permute.xlu0 %1172
    %v1176 = vsel %vm149, %v864, 0
    %1178 = vmatprep.subr.mxu0 0.0
    %1179 = vmatpush1.msra.mxu0 %v1173
    %1180 = vmatprep.subr.mxu0 0.0
    %1181 = vmatpush1.msra.mxu0 0.0
    %1182 = vmatprep.subr.mxu0 0.0
    %1183 = vmatpush1.msra.mxu0 0.0
    %1184 = vmatprep.subr.mxu0 0.0
    %1185 = vmatpush1.msra.mxu0 0.0
    %1186 = vmatprep.subr.mxu0 0.0
    %1187 = vmatpush1.msra.mxu0 0.0
    %1188 = vmatprep.subr.mxu0 0.0
    %1189 = vmatpush1.msra.mxu0 0.0
    %1190 = vmatprep.subr.mxu0 0.0
    %1191 = vmatpush1.msra.mxu0 0.0
    %1192 = vmatprep.subr.mxu0 0.0
    %1193 = vmatpush1.msra.mxu0 0.0
    %1194 = vmatprep.subr.mxu0 0.0
    %1195 = vmatpush1.msra.mxu0 0.0
    %1196 = vmatprep.subr.mxu0 0.0
    %1197 = vmatpush1.msra.mxu0 0.0
    %1198 = vmatprep.subr.mxu0 0.0
    %1199 = vmatpush1.msra.mxu0 0.0
    %1200 = vmatprep.subr.mxu0 0.0
    %1201 = vmatpush1.msra.mxu0 0.0
    %1202 = vmatprep.subr.mxu0 0.0
    %1203 = vmatpush1.msra.mxu0 0.0
    %1204 = vmatprep.subr.mxu0 0.0
    %1205 = vmatpush1.msra.mxu0 0.0
    %1206 = vmatprep.subr.mxu0 0.0
    %1207 = vmatpush1.msra.mxu0 0.0
    %1208 = vmatprep.subr.mxu0 0.0
    %1209 = vmatpush1.msra.mxu0 0.0
    %1210 = vmatprep.subr.mxu0 0.0
    %1211 = vmatpush1.msra.mxu0 0.0
    %1212 = vmatprep.subr.mxu0 0.0
    %1213 = vmatpush1.msra.mxu0 0.0
    %1214 = vmatprep.subr.mxu0 0.0
    %1215 = vmatpush1.msra.mxu0 0.0
    %1216 = vmatprep.subr.mxu0 0.0
    %1217 = vmatpush1.msra.mxu0 0.0
    %1218 = vmatprep.subr.mxu0 0.0
    %1219 = vmatpush1.msra.mxu0 0.0
    %1220 = vmatprep.subr.mxu0 0.0
    %1221 = vmatpush1.msra.mxu0 0.0
    %1222 = vmatprep.subr.mxu0 0.0
    %1223 = vmatpush1.msra.mxu0 0.0
    %1224 = vmatprep.subr.mxu0 0.0
    %1225 = vmatpush1.msra.mxu0 0.0
    %1226 = vmatprep.subr.mxu0 0.0
    %1227 = vmatpush1.msra.mxu0 0.0
    %1228 = vmatprep.subr.mxu0 0.0
    %1229 = vmatpush1.msra.mxu0 0.0
    %1230 = vmatprep.subr.mxu0 0.0
    %1231 = vmatpush1.msra.mxu0 0.0
    %1232 = vmatprep.subr.mxu0 0.0
    %1233 = vmatpush1.msra.mxu0 0.0
    %1234 = vmatprep.subr.mxu0 0.0
    %1235 = vmatpush1.msra.mxu0 0.0
    %1236 = vmatprep.subr.mxu0 0.0
    %1237 = vmatpush1.msra.mxu0 0.0
    %1238 = vmatprep.subr.mxu0 0.0
    %1239 = vmatpush1.msra.mxu0 0.0
    %1240 = vmatprep.subr.mxu0 0.0
    %1241 = vmatpush1.msra.mxu0 0.0
    %1242 = vmatprep.mubr.f32.mxu0 0.0
    %1243 = vmatmul.mubr.f32.gmra.mrb[0].mxu0 %v1176
    %v1244 = vpop.f32.mrb[0].mxu0
    %v1245 = vadd.f32 0.0, %v1244
    %v1246 = vpop.f32.mrb[0].mxu0
    %1247 = vdwg.mxu0
    %1248 = vrot.lane.b32.xlu0 %v142, 64
    %v1249 = vpop.permute.xlu0 %1248
    %v1252 = vsel %vm149, %v865, 0
    %1254 = vmatprep.subr.mxu0 0.0
    %1255 = vmatpush1.msra.mxu0 %v1249
    %1256 = vmatprep.subr.mxu0 0.0
    %1257 = vmatpush1.msra.mxu0 0.0
    %1258 = vmatprep.subr.mxu0 0.0
    %1259 = vmatpush1.msra.mxu0 0.0
    %1260 = vmatprep.subr.mxu0 0.0
    %1261 = vmatpush1.msra.mxu0 0.0
    %1262 = vmatprep.subr.mxu0 0.0
    %1263 = vmatpush1.msra.mxu0 0.0
    %1264 = vmatprep.subr.mxu0 0.0
    %1265 = vmatpush1.msra.mxu0 0.0
    %1266 = vmatprep.subr.mxu0 0.0
    %1267 = vmatpush1.msra.mxu0 0.0
    %1268 = vmatprep.subr.mxu0 0.0
    %1269 = vmatpush1.msra.mxu0 0.0
    %1270 = vmatprep.subr.mxu0 0.0
    %1271 = vmatpush1.msra.mxu0 0.0
    %1272 = vmatprep.subr.mxu0 0.0
    %1273 = vmatpush1.msra.mxu0 0.0
    %1274 = vmatprep.subr.mxu0 0.0
    %1275 = vmatpush1.msra.mxu0 0.0
    %1276 = vmatprep.subr.mxu0 0.0
    %1277 = vmatpush1.msra.mxu0 0.0
    %1278 = vmatprep.subr.mxu0 0.0
    %1279 = vmatpush1.msra.mxu0 0.0
    %1280 = vmatprep.subr.mxu0 0.0
    %1281 = vmatpush1.msra.mxu0 0.0
    %1282 = vmatprep.subr.mxu0 0.0
    %1283 = vmatpush1.msra.mxu0 0.0
    %1284 = vmatprep.subr.mxu0 0.0
    %1285 = vmatpush1.msra.mxu0 0.0
    %1286 = vmatprep.subr.mxu0 0.0
    %1287 = vmatpush1.msra.mxu0 0.0
    %1288 = vmatprep.subr.mxu0 0.0
    %1289 = vmatpush1.msra.mxu0 0.0
    %1290 = vmatprep.subr.mxu0 0.0
    %1291 = vmatpush1.msra.mxu0 0.0
    %1292 = vmatprep.subr.mxu0 0.0
    %1293 = vmatpush1.msra.mxu0 0.0
    %1294 = vmatprep.subr.mxu0 0.0
    %1295 = vmatpush1.msra.mxu0 0.0
    %1296 = vmatprep.subr.mxu0 0.0
    %1297 = vmatpush1.msra.mxu0 0.0
    %1298 = vmatprep.subr.mxu0 0.0
    %1299 = vmatpush1.msra.mxu0 0.0
    %1300 = vmatprep.subr.mxu0 0.0
    %1301 = vmatpush1.msra.mxu0 0.0
    %1302 = vmatprep.subr.mxu0 0.0
    %1303 = vmatpush1.msra.mxu0 0.0
    %1304 = vmatprep.subr.mxu0 0.0
    %1305 = vmatpush1.msra.mxu0 0.0
    %1306 = vmatprep.subr.mxu0 0.0
    %1307 = vmatpush1.msra.mxu0 0.0
    %1308 = vmatprep.subr.mxu0 0.0
    %1309 = vmatpush1.msra.mxu0 0.0
    %1310 = vmatprep.subr.mxu0 0.0
    %1311 = vmatpush1.msra.mxu0 0.0
    %1312 = vmatprep.subr.mxu0 0.0
    %1313 = vmatpush1.msra.mxu0 0.0
    %1314 = vmatprep.subr.mxu0 0.0
    %1315 = vmatpush1.msra.mxu0 0.0
    %1316 = vmatprep.subr.mxu0 0.0
    %1317 = vmatpush1.msra.mxu0 0.0
    %1318 = vmatprep.mubr.f32.mxu0 0.0
    %1319 = vmatmul.mubr.f32.gmra.mrb[0].mxu0 %v1252
    %v1320 = vpop.f32.mrb[0].mxu0
    %v1321 = vadd.f32 0.0, %v1320
    %v1322 = vpop.f32.mrb[0].mxu0
    %1323 = vdwg.mxu0
    %1324 = vrot.lane.b32.xlu0 %v144, 64
    %v1325 = vpop.permute.xlu0 %1324
    %v1328 = vsel %vm149, %v866, 0
    %1330 = vmatprep.subr.mxu0 0.0
    %1331 = vmatpush1.msra.mxu0 %v1325
    %1332 = vmatprep.subr.mxu0 0.0
    %1333 = vmatpush1.msra.mxu0 0.0
    %1334 = vmatprep.subr.mxu0 0.0
    %1335 = vmatpush1.msra.mxu0 0.0
    %1336 = vmatprep.subr.mxu0 0.0
    %1337 = vmatpush1.msra.mxu0 0.0
    %1338 = vmatprep.subr.mxu0 0.0
    %1339 = vmatpush1.msra.mxu0 0.0
    %1340 = vmatprep.subr.mxu0 0.0
    %1341 = vmatpush1.msra.mxu0 0.0
    %1342 = vmatprep.subr.mxu0 0.0
    %1343 = vmatpush1.msra.mxu0 0.0
    %1344 = vmatprep.subr.mxu0 0.0
    %1345 = vmatpush1.msra.mxu0 0.0
    %1346 = vmatprep.subr.mxu0 0.0
    %1347 = vmatpush1.msra.mxu0 0.0
    %1348 = vmatprep.subr.mxu0 0.0
    %1349 = vmatpush1.msra.mxu0 0.0
    %1350 = vmatprep.subr.mxu0 0.0
    %1351 = vmatpush1.msra.mxu0 0.0
    %1352 = vmatprep.subr.mxu0 0.0
    %1353 = vmatpush1.msra.mxu0 0.0
    %1354 = vmatprep.subr.mxu0 0.0
    %1355 = vmatpush1.msra.mxu0 0.0
    %1356 = vmatprep.subr.mxu0 0.0
    %1357 = vmatpush1.msra.mxu0 0.0
    %1358 = vmatprep.subr.mxu0 0.0
    %1359 = vmatpush1.msra.mxu0 0.0
    %1360 = vmatprep.subr.mxu0 0.0
    %1361 = vmatpush1.msra.mxu0 0.0
    %1362 = vmatprep.subr.mxu0 0.0
    %1363 = vmatpush1.msra.mxu0 0.0
    %1364 = vmatprep.subr.mxu0 0.0
    %1365 = vmatpush1.msra.mxu0 0.0
    %1366 = vmatprep.subr.mxu0 0.0
    %1367 = vmatpush1.msra.mxu0 0.0
    %1368 = vmatprep.subr.mxu0 0.0
    %1369 = vmatpush1.msra.mxu0 0.0
    %1370 = vmatprep.subr.mxu0 0.0
    %1371 = vmatpush1.msra.mxu0 0.0
    %1372 = vmatprep.subr.mxu0 0.0
    %1373 = vmatpush1.msra.mxu0 0.0
    %1374 = vmatprep.subr.mxu0 0.0
    %1375 = vmatpush1.msra.mxu0 0.0
    %1376 = vmatprep.subr.mxu0 0.0
    %1377 = vmatpush1.msra.mxu0 0.0
    %1378 = vmatprep.subr.mxu0 0.0
    %1379 = vmatpush1.msra.mxu0 0.0
    %1380 = vmatprep.subr.mxu0 0.0
    %1381 = vmatpush1.msra.mxu0 0.0
    %1382 = vmatprep.subr.mxu0 0.0
    %1383 = vmatpush1.msra.mxu0 0.0
    %1384 = vmatprep.subr.mxu0 0.0
    %1385 = vmatpush1.msra.mxu0 0.0
    %1386 = vmatprep.subr.mxu0 0.0
    %1387 = vmatpush1.msra.mxu0 0.0
    %1388 = vmatprep.subr.mxu0 0.0
    %1389 = vmatpush1.msra.mxu0 0.0
    %1390 = vmatprep.subr.mxu0 0.0
    %1391 = vmatpush1.msra.mxu0 0.0
    %1392 = vmatprep.subr.mxu0 0.0
    %1393 = vmatpush1.msra.mxu0 0.0
    %1394 = vmatprep.mubr.f32.mxu0 0.0
    %1395 = vmatmul.mubr.f32.gmra.mrb[0].mxu0 %v1328
    %v1396 = vpop.f32.mrb[0].mxu0
    %v1397 = vadd.f32 0.0, %v1396
    %v1398 = vpop.f32.mrb[0].mxu0
    %1399 = vdwg.mxu0
    %1400 = vrot.lane.b32.xlu0 %v146, 64
    %v1401 = vpop.permute.xlu0 %1400
    %v1404 = vsel %vm149, %v867, 0
    %1406 = vmatprep.subr.mxu0 0.0
    %1407 = vmatpush1.msra.mxu0 %v1401
    %1408 = vmatprep.subr.mxu0 0.0
    %1409 = vmatpush1.msra.mxu0 0.0
    %1410 = vmatprep.subr.mxu0 0.0
    %1411 = vmatpush1.msra.mxu0 0.0
    %1412 = vmatprep.subr.mxu0 0.0
    %1413 = vmatpush1.msra.mxu0 0.0
    %1414 = vmatprep.subr.mxu0 0.0
    %1415 = vmatpush1.msra.mxu0 0.0
    %1416 = vmatprep.subr.mxu0 0.0
    %1417 = vmatpush1.msra.mxu0 0.0
    %1418 = vmatprep.subr.mxu0 0.0
    %1419 = vmatpush1.msra.mxu0 0.0
    %1420 = vmatprep.subr.mxu0 0.0
    %1421 = vmatpush1.msra.mxu0 0.0
    %1422 = vmatprep.subr.mxu0 0.0
    %1423 = vmatpush1.msra.mxu0 0.0
    %1424 = vmatprep.subr.mxu0 0.0
    %1425 = vmatpush1.msra.mxu0 0.0
    %1426 = vmatprep.subr.mxu0 0.0
    %1427 = vmatpush1.msra.mxu0 0.0
    %1428 = vmatprep.subr.mxu0 0.0
    %1429 = vmatpush1.msra.mxu0 0.0
    %1430 = vmatprep.subr.mxu0 0.0
    %1431 = vmatpush1.msra.mxu0 0.0
    %1432 = vmatprep.subr.mxu0 0.0
    %1433 = vmatpush1.msra.mxu0 0.0
    %1434 = vmatprep.subr.mxu0 0.0
    %1435 = vmatpush1.msra.mxu0 0.0
    %1436 = vmatprep.subr.mxu0 0.0
    %1437 = vmatpush1.msra.mxu0 0.0
    %1438 = vmatprep.subr.mxu0 0.0
    %1439 = vmatpush1.msra.mxu0 0.0
    %1440 = vmatprep.subr.mxu0 0.0
    %1441 = vmatpush1.msra.mxu0 0.0
    %1442 = vmatprep.subr.mxu0 0.0
    %1443 = vmatpush1.msra.mxu0 0.0
    %1444 = vmatprep.subr.mxu0 0.0
    %1445 = vmatpush1.msra.mxu0 0.0
    %1446 = vmatprep.subr.mxu0 0.0
    %1447 = vmatpush1.msra.mxu0 0.0
    %1448 = vmatprep.subr.mxu0 0.0
    %1449 = vmatpush1.msra.mxu0 0.0
    %1450 = vmatprep.subr.mxu0 0.0
    %1451 = vmatpush1.msra.mxu0 0.0
    %1452 = vmatprep.subr.mxu0 0.0
    %1453 = vmatpush1.msra.mxu0 0.0
    %1454 = vmatprep.subr.mxu0 0.0
    %1455 = vmatpush1.msra.mxu0 0.0
    %1456 = vmatprep.subr.mxu0 0.0
    %1457 = vmatpush1.msra.mxu0 0.0
    %1458 = vmatprep.subr.mxu0 0.0
    %1459 = vmatpush1.msra.mxu0 0.0
    %1460 = vmatprep.subr.mxu0 0.0
    %1461 = vmatpush1.msra.mxu0 0.0
    %1462 = vmatprep.subr.mxu0 0.0
    %1463 = vmatpush1.msra.mxu0 0.0
    %1464 = vmatprep.subr.mxu0 0.0
    %1465 = vmatpush1.msra.mxu0 0.0
    %1466 = vmatprep.subr.mxu0 0.0
    %1467 = vmatpush1.msra.mxu0 0.0
    %1468 = vmatprep.subr.mxu0 0.0
    %1469 = vmatpush1.msra.mxu0 0.0
    %1470 = vmatprep.mubr.f32.mxu0 0.0
    %1471 = vmatmul.mubr.f32.gmra.mrb[0].mxu0 %v1404
    %v1472 = vpop.f32.mrb[0].mxu0
    %v1473 = vadd.f32 0.0, %v1472
    %v1474 = vpop.f32.mrb[0].mxu0
    %1475 = vdwg.mxu0
    %v1477 = vsel %vm149, %v1093, 0
    %v1480 = vsel %vm149, %v1169, 0
    %1482 = vmatprep.subr.mxu0 0.0
    %1483 = vmatpush1.msra.mxu0 %v36
    %1484 = vmatprep.subr.mxu0 0.0
    %1485 = vmatpush1.msra.mxu0 0.0
    %1486 = vmatprep.subr.mxu0 0.0
    %1487 = vmatpush1.msra.mxu0 0.0
    %1488 = vmatprep.subr.mxu0 0.0
    %1489 = vmatpush1.msra.mxu0 0.0
    %1490 = vmatprep.subr.mxu0 0.0
    %1491 = vmatpush1.msra.mxu0 0.0
    %1492 = vmatprep.subr.mxu0 0.0
    %1493 = vmatpush1.msra.mxu0 0.0
    %1494 = vmatprep.subr.mxu0 0.0
    %1495 = vmatpush1.msra.mxu0 0.0
    %1496 = vmatprep.subr.mxu0 0.0
    %1497 = vmatpush1.msra.mxu0 0.0
    %1498 = vmatprep.subr.mxu0 0.0
    %1499 = vmatpush1.msra.mxu0 0.0
    %1500 = vmatprep.subr.mxu0 0.0
    %1501 = vmatpush1.msra.mxu0 0.0
    %1502 = vmatprep.subr.mxu0 0.0
    %1503 = vmatpush1.msra.mxu0 0.0
    %1504 = vmatprep.subr.mxu0 0.0
    %1505 = vmatpush1.msra.mxu0 0.0
    %1506 = vmatprep.subr.mxu0 0.0
    %1507 = vmatpush1.msra.mxu0 0.0
    %1508 = vmatprep.subr.mxu0 0.0
    %1509 = vmatpush1.msra.mxu0 0.0
    %1510 = vmatprep.subr.mxu0 0.0
    %1511 = vmatpush1.msra.mxu0 0.0
    %1512 = vmatprep.subr.mxu0 0.0
    %1513 = vmatpush1.msra.mxu0 0.0
    %1514 = vmatprep.subr.mxu0 0.0
    %1515 = vmatpush1.msra.mxu0 0.0
    %1516 = vmatprep.subr.mxu0 0.0
    %1517 = vmatpush1.msra.mxu0 0.0
    %1518 = vmatprep.subr.mxu0 0.0
    %1519 = vmatpush1.msra.mxu0 0.0
    %1520 = vmatprep.subr.mxu0 0.0
    %1521 = vmatpush1.msra.mxu0 0.0
    %1522 = vmatprep.subr.mxu0 0.0
    %1523 = vmatpush1.msra.mxu0 0.0
    %1524 = vmatprep.subr.mxu0 0.0
    %1525 = vmatpush1.msra.mxu0 0.0
    %1526 = vmatprep.subr.mxu0 0.0
    %1527 = vmatpush1.msra.mxu0 0.0
    %1528 = vmatprep.subr.mxu0 0.0
    %1529 = vmatpush1.msra.mxu0 0.0
    %1530 = vmatprep.subr.mxu0 0.0
    %1531 = vmatpush1.msra.mxu0 0.0
    %1532 = vmatprep.subr.mxu0 0.0
    %1533 = vmatpush1.msra.mxu0 0.0
    %1534 = vmatprep.subr.mxu0 0.0
    %1535 = vmatpush1.msra.mxu0 0.0
    %1536 = vmatprep.subr.mxu0 0.0
    %1537 = vmatpush1.msra.mxu0 0.0
    %1538 = vmatprep.subr.mxu0 0.0
    %1539 = vmatpush1.msra.mxu0 0.0
    %1540 = vmatprep.subr.mxu0 0.0
    %1541 = vmatpush1.msra.mxu0 0.0
    %1542 = vmatprep.subr.mxu0 0.0
    %1543 = vmatpush1.msra.mxu0 0.0
    %1544 = vmatprep.subr.mxu0 0.0
    %1545 = vmatpush1.msra.mxu0 0.0
    %1546 = vmatprep.mubr.f32.mxu0 0.0
    %1547 = vmatmul.mubr.f32.gmra.mrb[0].mxu0 %v1477
    %v1548 = vpop.f32.mrb[0].mxu0
    %v1549 = vadd.f32 0.0, %v1548
    %v1550 = vpop.f32.mrb[0].mxu0
    %1551 = vmatprep.mubr.f32.mxu0 0.0
    %1552 = vmatmul.mubr.f32.gmra.mrb[0].mxu0 %v1480
    %v1553 = vpop.f32.mrb[0].mxu0
    %v1554 = vadd.f32 0.0, %v1553
    %v1555 = vpop.f32.mrb[0].mxu0
    %1556 = vdwg.mxu0
    %v1558 = vsel %vm149, %v941, 0
    %v1561 = vsel %vm149, %v1017, 0
    %1563 = vmatprep.subr.mxu0 0.0
    %1564 = vmatpush1.msra.mxu0 %v35
    %1565 = vmatprep.subr.mxu0 0.0
    %1566 = vmatpush1.msra.mxu0 0.0
    %1567 = vmatprep.subr.mxu0 0.0
    %1568 = vmatpush1.msra.mxu0 0.0
    %1569 = vmatprep.subr.mxu0 0.0
    %1570 = vmatpush1.msra.mxu0 0.0
    %1571 = vmatprep.subr.mxu0 0.0
    %1572 = vmatpush1.msra.mxu0 0.0
    %1573 = vmatprep.subr.mxu0 0.0
    %1574 = vmatpush1.msra.mxu0 0.0
    %1575 = vmatprep.subr.mxu0 0.0
    %1576 = vmatpush1.msra.mxu0 0.0
    %1577 = vmatprep.subr.mxu0 0.0
    %1578 = vmatpush1.msra.mxu0 0.0
    %1579 = vmatprep.subr.mxu0 0.0
    %1580 = vmatpush1.msra.mxu0 0.0
    %1581 = vmatprep.subr.mxu0 0.0
    %1582 = vmatpush1.msra.mxu0 0.0
    %1583 = vmatprep.subr.mxu0 0.0
    %1584 = vmatpush1.msra.mxu0 0.0
    %1585 = vmatprep.subr.mxu0 0.0
    %1586 = vmatpush1.msra.mxu0 0.0
    %1587 = vmatprep.subr.mxu0 0.0
    %1588 = vmatpush1.msra.mxu0 0.0
    %1589 = vmatprep.subr.mxu0 0.0
    %1590 = vmatpush1.msra.mxu0 0.0
    %1591 = vmatprep.subr.mxu0 0.0
    %1592 = vmatpush1.msra.mxu0 0.0
    %1593 = vmatprep.subr.mxu0 0.0
    %1594 = vmatpush1.msra.mxu0 0.0
    %1595 = vmatprep.subr.mxu0 0.0
    %1596 = vmatpush1.msra.mxu0 0.0
    %1597 = vmatprep.subr.mxu0 0.0
    %1598 = vmatpush1.msra.mxu0 0.0
    %1599 = vmatprep.subr.mxu0 0.0
    %1600 = vmatpush1.msra.mxu0 0.0
    %1601 = vmatprep.subr.mxu0 0.0
    %1602 = vmatpush1.msra.mxu0 0.0
    %1603 = vmatprep.subr.mxu0 0.0
    %1604 = vmatpush1.msra.mxu0 0.0
    %1605 = vmatprep.subr.mxu0 0.0
    %1606 = vmatpush1.msra.mxu0 0.0
    %1607 = vmatprep.subr.mxu0 0.0
    %1608 = vmatpush1.msra.mxu0 0.0
    %1609 = vmatprep.subr.mxu0 0.0
    %1610 = vmatpush1.msra.mxu0 0.0
    %1611 = vmatprep.subr.mxu0 0.0
    %1612 = vmatpush1.msra.mxu0 0.0
    %1613 = vmatprep.subr.mxu0 0.0
    %1614 = vmatpush1.msra.mxu0 0.0
    %1615 = vmatprep.subr.mxu0 0.0
    %1616 = vmatpush1.msra.mxu0 0.0
    %1617 = vmatprep.subr.mxu0 0.0
    %1618 = vmatpush1.msra.mxu0 0.0
    %1619 = vmatprep.subr.mxu0 0.0
    %1620 = vmatpush1.msra.mxu0 0.0
    %1621 = vmatprep.subr.mxu0 0.0
    %1622 = vmatpush1.msra.mxu0 0.0
    %1623 = vmatprep.subr.mxu0 0.0
    %1624 = vmatpush1.msra.mxu0 0.0
    %1625 = vmatprep.subr.mxu0 0.0
    %1626 = vmatpush1.msra.mxu0 0.0
    %1627 = vmatprep.mubr.f32.mxu0 0.0
    %1628 = vmatmul.mubr.f32.gmra.mrb[0].mxu0 %v1558
    %v1629 = vpop.f32.mrb[0].mxu0
    %v1630 = vadd.f32 %v1549, %v1629
    %v1631 = vpop.f32.mrb[0].mxu0
    %1632 = vmatprep.mubr.f32.mxu0 0.0
    %1633 = vmatmul.mubr.f32.gmra.mrb[0].mxu0 %v1561
    %v1634 = vpop.f32.mrb[0].mxu0
    %v1635 = vadd.f32 %v1554, %v1634
    %v1636 = vpop.f32.mrb[0].mxu0
    %1637 = vdwg.mxu0
    %v1639 = vsel %vm149, %v1245, 0
    %v1642 = vsel %vm149, %v1321, 0
    %1644 = vmatprep.subr.mxu0 0.0
    %1645 = vmatpush1.msra.mxu0 %v37
    %1646 = vmatprep.subr.mxu0 0.0
    %1647 = vmatpush1.msra.mxu0 0.0
    %1648 = vmatprep.subr.mxu0 0.0
    %1649 = vmatpush1.msra.mxu0 0.0
    %1650 = vmatprep.subr.mxu0 0.0
    %1651 = vmatpush1.msra.mxu0 0.0
    %1652 = vmatprep.subr.mxu0 0.0
    %1653 = vmatpush1.msra.mxu0 0.0
    %1654 = vmatprep.subr.mxu0 0.0
    %1655 = vmatpush1.msra.mxu0 0.0
    %1656 = vmatprep.subr.mxu0 0.0
    %1657 = vmatpush1.msra.mxu0 0.0
    %1658 = vmatprep.subr.mxu0 0.0
    %1659 = vmatpush1.msra.mxu0 0.0
    %1660 = vmatprep.subr.mxu0 0.0
    %1661 = vmatpush1.msra.mxu0 0.0
    %1662 = vmatprep.subr.mxu0 0.0
    %1663 = vmatpush1.msra.mxu0 0.0
    %1664 = vmatprep.subr.mxu0 0.0
    %1665 = vmatpush1.msra.mxu0 0.0
    %1666 = vmatprep.subr.mxu0 0.0
    %1667 = vmatpush1.msra.mxu0 0.0
    %1668 = vmatprep.subr.mxu0 0.0
    %1669 = vmatpush1.msra.mxu0 0.0
    %1670 = vmatprep.subr.mxu0 0.0
    %1671 = vmatpush1.msra.mxu0 0.0
    %1672 = vmatprep.subr.mxu0 0.0
    %1673 = vmatpush1.msra.mxu0 0.0
    %1674 = vmatprep.subr.mxu0 0.0
    %1675 = vmatpush1.msra.mxu0 0.0
    %1676 = vmatprep.subr.mxu0 0.0
    %1677 = vmatpush1.msra.mxu0 0.0
    %1678 = vmatprep.subr.mxu0 0.0
    %1679 = vmatpush1.msra.mxu0 0.0
    %1680 = vmatprep.subr.mxu0 0.0
    %1681 = vmatpush1.msra.mxu0 0.0
    %1682 = vmatprep.subr.mxu0 0.0
    %1683 = vmatpush1.msra.mxu0 0.0
    %1684 = vmatprep.subr.mxu0 0.0
    %1685 = vmatpush1.msra.mxu0 0.0
    %1686 = vmatprep.subr.mxu0 0.0
    %1687 = vmatpush1.msra.mxu0 0.0
    %1688 = vmatprep.subr.mxu0 0.0
    %1689 = vmatpush1.msra.mxu0 0.0
    %1690 = vmatprep.subr.mxu0 0.0
    %1691 = vmatpush1.msra.mxu0 0.0
    %1692 = vmatprep.subr.mxu0 0.0
    %1693 = vmatpush1.msra.mxu0 0.0
    %1694 = vmatprep.subr.mxu0 0.0
    %1695 = vmatpush1.msra.mxu0 0.0
    %1696 = vmatprep.subr.mxu0 0.0
    %1697 = vmatpush1.msra.mxu0 0.0
    %1698 = vmatprep.subr.mxu0 0.0
    %1699 = vmatpush1.msra.mxu0 0.0
    %1700 = vmatprep.subr.mxu0 0.0
    %1701 = vmatpush1.msra.mxu0 0.0
    %1702 = vmatprep.subr.mxu0 0.0
    %1703 = vmatpush1.msra.mxu0 0.0
    %1704 = vmatprep.subr.mxu0 0.0
    %1705 = vmatpush1.msra.mxu0 0.0
    %1706 = vmatprep.subr.mxu0 0.0
    %1707 = vmatpush1.msra.mxu0 0.0
    %1708 = vmatprep.mubr.f32.mxu0 0.0
    %1709 = vmatmul.mubr.f32.gmra.mrb[0].mxu0 %v1639
    %v1710 = vpop.f32.mrb[0].mxu0
    %v1711 = vadd.f32 0.0, %v1710
    %v1712 = vpop.f32.mrb[0].mxu0
    %1713 = vmatprep.mubr.f32.mxu0 0.0
    %1714 = vmatmul.mubr.f32.gmra.mrb[0].mxu0 %v1642
    %v1715 = vpop.f32.mrb[0].mxu0
    %v1716 = vadd.f32 0.0, %v1715
    %v1717 = vpop.f32.mrb[0].mxu0
    %1718 = vdwg.mxu0
    %v1719 = vadd.f32 %v1630, %v1711
    %v1720 = vadd.f32 %v1635, %v1716
    %v1722 = vsel %vm149, %v1397, 0
    %v1725 = vsel %vm149, %v1473, 0
    %1727 = vmatprep.subr.mxu0 0.0
    %1728 = vmatpush1.msra.mxu0 %v38
    %1729 = vmatprep.subr.mxu0 0.0
    %1730 = vmatpush1.msra.mxu0 0.0
    %1731 = vmatprep.subr.mxu0 0.0
    %1732 = vmatpush1.msra.mxu0 0.0
    %1733 = vmatprep.subr.mxu0 0.0
    %1734 = vmatpush1.msra.mxu0 0.0
    %1735 = vmatprep.subr.mxu0 0.0
    %1736 = vmatpush1.msra.mxu0 0.0
    %1737 = vmatprep.subr.mxu0 0.0
    %1738 = vmatpush1.msra.mxu0 0.0
    %1739 = vmatprep.subr.mxu0 0.0
    %1740 = vmatpush1.msra.mxu0 0.0
    %1741 = vmatprep.subr.mxu0 0.0
    %1742 = vmatpush1.msra.mxu0 0.0
    %1743 = vmatprep.subr.mxu0 0.0
    %1744 = vmatpush1.msra.mxu0 0.0
    %1745 = vmatprep.subr.mxu0 0.0
    %1746 = vmatpush1.msra.mxu0 0.0
    %1747 = vmatprep.subr.mxu0 0.0
    %1748 = vmatpush1.msra.mxu0 0.0
    %1749 = vmatprep.subr.mxu0 0.0
    %1750 = vmatpush1.msra.mxu0 0.0
    %1751 = vmatprep.subr.mxu0 0.0
    %1752 = vmatpush1.msra.mxu0 0.0
    %1753 = vmatprep.subr.mxu0 0.0
    %1754 = vmatpush1.msra.mxu0 0.0
    %1755 = vmatprep.subr.mxu0 0.0
    %1756 = vmatpush1.msra.mxu0 0.0
    %1757 = vmatprep.subr.mxu0 0.0
    %1758 = vmatpush1.msra.mxu0 0.0
    %1759 = vmatprep.subr.mxu0 0.0
    %1760 = vmatpush1.msra.mxu0 0.0
    %1761 = vmatprep.subr.mxu0 0.0
    %1762 = vmatpush1.msra.mxu0 0.0
    %1763 = vmatprep.subr.mxu0 0.0
    %1764 = vmatpush1.msra.mxu0 0.0
    %1765 = vmatprep.subr.mxu0 0.0
    %1766 = vmatpush1.msra.mxu0 0.0
    %1767 = vmatprep.subr.mxu0 0.0
    %1768 = vmatpush1.msra.mxu0 0.0
    %1769 = vmatprep.subr.mxu0 0.0
    %1770 = vmatpush1.msra.mxu0 0.0
    %1771 = vmatprep.subr.mxu0 0.0
    %1772 = vmatpush1.msra.mxu0 0.0
    %1773 = vmatprep.subr.mxu0 0.0
    %1774 = vmatpush1.msra.mxu0 0.0
    %1775 = vmatprep.subr.mxu0 0.0
    %1776 = vmatpush1.msra.mxu0 0.0
    %1777 = vmatprep.subr.mxu0 0.0
    %1778 = vmatpush1.msra.mxu0 0.0
    %1779 = vmatprep.subr.mxu0 0.0
    %1780 = vmatpush1.msra.mxu0 0.0
    %1781 = vmatprep.subr.mxu0 0.0
    %1782 = vmatpush1.msra.mxu0 0.0
    %1783 = vmatprep.subr.mxu0 0.0
    %1784 = vmatpush1.msra.mxu0 0.0
    %1785 = vmatprep.subr.mxu0 0.0
    %1786 = vmatpush1.msra.mxu0 0.0
    %1787 = vmatprep.subr.mxu0 0.0
    %1788 = vmatpush1.msra.mxu0 0.0
    %1789 = vmatprep.subr.mxu0 0.0
    %1790 = vmatpush1.msra.mxu0 0.0
    %1791 = vmatprep.mubr.f32.mxu0 0.0
    %1792 = vmatmul.mubr.f32.gmra.mrb[0].mxu0 %v1722
    %v1793 = vpop.f32.mrb[0].mxu0
    %v1794 = vadd.f32 0.0, %v1793
    %v1795 = vpop.f32.mrb[0].mxu0
    %1796 = vmatprep.mubr.f32.mxu0 0.0
    %1797 = vmatmul.mubr.f32.gmra.mrb[0].mxu0 %v1725
    %v1798 = vpop.f32.mrb[0].mxu0
    %v1799 = vadd.f32 0.0, %v1798
    %v1800 = vpop.f32.mrb[0].mxu0
    %1801 = vdwg.mxu0
    %v1802 = vadd.f32 %v1719, %v1794
    %v1803 = vadd.f32 %v1720, %v1799
    %v1804 = vadd.f32 %v1802, %v44
    %v1805 = vadd.f32 %v1803, %v44
    %v1806 = vadd.f32 %v29, %v1804
    %v1807 = vadd.f32 %v30, %v1805
    %v1808 = vsel %vm51, %v1806, 0.0
    %1809 = vadd.xlane.f32.xlu0 %v1808
    %v1810 = vpop.xlane.xlu0 %1809
    %v1811 = vsel %vm51, %v1807, 0.0
    %1812 = vadd.xlane.f32.xlu0 %v1811
    %v1813 = vpop.xlane.xlu0 %1812
    %v1814 = vrcp.pop 32.0
    %v1815 = vmul.f32 %v1810, %v1814
    %v1816 = vmul.f32 %v1813, %v1814
    %v1817 = vsub.f32 %v1806, %v1815
    %v1818 = vsub.f32 %v1807, %v1816
    %v1819 = vmul.f32 %v1817, %v1817
    %v1820 = vmul.f32 %v1818, %v1818
    %v1821 = vsel %vm51, %v1819, 0.0
    %1822 = vadd.xlane.f32.xlu0 %v1821
    %v1823 = vpop.xlane.xlu0 %1822
    %v1824 = vsel %vm51, %v1820, 0.0
    %1825 = vadd.xlane.f32.xlu0 %v1824
    %v1826 = vpop.xlane.xlu0 %1825
    %v1827 = vmul.f32 %v1823, %v1814
    %v1828 = vmul.f32 %v1826, %v1814
    %v1829 = vadd.f32 %v1827, 1e-05
    %v1830 = vadd.f32 %v1828, 1e-05
    %v1831 = vrsqrt.pop %v1829
    %v1832 = vrsqrt.pop %v1830
    %v1833 = vmul.f32 %v1817, %v1831
    %v1834 = vmul.f32 %v1818, %v1832
    %v1835 = vmul.f32 %v1833, %v45
    %v1836 = vmul.f32 %v1834, %v45
    %v1837 = vadd.f32 %v1835, %v46
    %v1838 = vadd.f32 %v1836, %v46
    %v1840 = vsel %vm51, %v1837, 0
    %v1843 = vsel %vm51, %v1838, 0
    %1845 = vmatprep.subr.mxu0 0.0
    %1846 = vmatpush1.msra.mxu0 %v39
    %1847 = vmatprep.subr.mxu0 0.0
    %1848 = vmatpush1.msra.mxu0 %v40
    %1849 = vmatprep.subr.mxu0 0.0
    %1850 = vmatpush1.msra.mxu0 %v41
    %1851 = vmatprep.subr.mxu0 0.0
    %1852 = vmatpush1.msra.mxu0 %v42
    %1853 = vmatprep.subr.mxu0 0.0
    %1854 = vmatpush1.msra.mxu0 0.0
    %1855 = vmatprep.subr.mxu0 0.0
    %1856 = vmatpush1.msra.mxu0 0.0
    %1857 = vmatprep.subr.mxu0 0.0
    %1858 = vmatpush1.msra.mxu0 0.0
    %1859 = vmatprep.subr.mxu0 0.0
    %1860 = vmatpush1.msra.mxu0 0.0
    %1861 = vmatprep.subr.mxu0 0.0
    %1862 = vmatpush1.msra.mxu0 0.0
    %1863 = vmatprep.subr.mxu0 0.0
    %1864 = vmatpush1.msra.mxu0 0.0
    %1865 = vmatprep.subr.mxu0 0.0
    %1866 = vmatpush1.msra.mxu0 0.0
    %1867 = vmatprep.subr.mxu0 0.0
    %1868 = vmatpush1.msra.mxu0 0.0
    %1869 = vmatprep.subr.mxu0 0.0
    %1870 = vmatpush1.msra.mxu0 0.0
    %1871 = vmatprep.subr.mxu0 0.0
    %1872 = vmatpush1.msra.mxu0 0.0
    %1873 = vmatprep.subr.mxu0 0.0
    %1874 = vmatpush1.msra.mxu0 0.0
    %1875 = vmatprep.subr.mxu0 0.0
    %1876 = vmatpush1.msra.mxu0 0.0
    %1877 = vmatprep.subr.mxu0 0.0
    %1878 = vmatpush1.msra.mxu0 0.0
    %1879 = vmatprep.subr.mxu0 0.0
    %1880 = vmatpush1.msra.mxu0 0.0
    %1881 = vmatprep.subr.mxu0 0.0
    %1882 = vmatpush1.msra.mxu0 0.0
    %1883 = vmatprep.subr.mxu0 0.0
    %1884 = vmatpush1.msra.mxu0 0.0
    %1885 = vmatprep.subr.mxu0 0.0
    %1886 = vmatpush1.msra.mxu0 0.0
    %1887 = vmatprep.subr.mxu0 0.0
    %1888 = vmatpush1.msra.mxu0 0.0
    %1889 = vmatprep.subr.mxu0 0.0
    %1890 = vmatpush1.msra.mxu0 0.0
    %1891 = vmatprep.subr.mxu0 0.0
    %1892 = vmatpush1.msra.mxu0 0.0
    %1893 = vmatprep.subr.mxu0 0.0
    %1894 = vmatpush1.msra.mxu0 0.0
    %1895 = vmatprep.subr.mxu0 0.0
    %1896 = vmatpush1.msra.mxu0 0.0
    %1897 = vmatprep.subr.mxu0 0.0
    %1898 = vmatpush1.msra.mxu0 0.0
    %1899 = vmatprep.subr.mxu0 0.0
    %1900 = vmatpush1.msra.mxu0 0.0
    %1901 = vmatprep.subr.mxu0 0.0
    %1902 = vmatpush1.msra.mxu0 0.0
    %1903 = vmatprep.subr.mxu0 0.0
    %1904 = vmatpush1.msra.mxu0 0.0
    %1905 = vmatprep.subr.mxu0 0.0
    %1906 = vmatpush1.msra.mxu0 0.0
    %1907 = vmatprep.subr.mxu0 0.0
    %1908 = vmatpush1.msra.mxu0 0.0
    %1909 = vmatprep.mubr.f32.mxu0 0.0
    %1910 = vmatmul.mubr.f32.gmra.mrb[0].mxu0 %v1840
    %v1911 = vpop.f32.mrb[0].mxu0
    %v1912 = vadd.f32 %v47, %v1911
    %v1913 = vpop.f32.mrb[0].mxu0
    %1914 = vmatprep.mubr.f32.mxu0 0.0
    %1915 = vmatmul.mubr.f32.gmra.mrb[0].mxu0 %v1843
    %v1916 = vpop.f32.mrb[0].mxu0
    %v1917 = vadd.f32 %v47, %v1916
    %v1918 = vpop.f32.mrb[0].mxu0
    %1919 = vdwg.mxu0
    %v1920 = vmax.f32 %v1912, 0.0
    %v1921 = vmax.f32 %v1917, 0.0
    %v1922 = vld [vmem:[%s2] sm:$0xff]
    %v1923 = vld [vmem:[%s2 + $0x8] sm:$0xff]
    %v1924 = vld [vmem:[%s2 + $0x10] sm:$0xff]
    %v1925 = vld [vmem:[%s2 + $0x18] sm:$0xff]
    %v1926 = vld [vmem:[%s2 + $0x20] sm:$0xff]
    %v1927 = vld [vmem:[%s2 + $0x28] sm:$0xff]
    %v1928 = vld [vmem:[%s2 + $0x30] sm:$0xff]
    %v1929 = vld [vmem:[%s2 + $0x38] sm:$0xff]
    %vm1930 = vcmask 523264
    %v1932 = vsel %vm1930, %v1920, 0
    %v1935 = vsel %vm1930, %v1921, 0
    %1937 = vmatprep.subr.mxu0 0.0
    %1938 = vmatpush1.msra.mxu0 %v1922
    %1939 = vmatprep.subr.mxu0 0.0
    %1940 = vmatpush1.msra.mxu0 %v1923
    %1941 = vmatprep.subr.mxu0 0.0
    %1942 = vmatpush1.msra.mxu0 %v1924
    %1943 = vmatprep.subr.mxu0 0.0
    %1944 = vmatpush1.msra.mxu0 %v1925
    %1945 = vmatprep.subr.mxu0 0.0
    %1946 = vmatpush1.msra.mxu0 %v1926
    %1947 = vmatprep.subr.mxu0 0.0
    %1948 = vmatpush1.msra.mxu0 %v1927
    %1949 = vmatprep.subr.mxu0 0.0
    %1950 = vmatpush1.msra.mxu0 %v1928
    %1951 = vmatprep.subr.mxu0 0.0
    %1952 = vmatpush1.msra.mxu0 %v1929
    %1953 = vmatprep.subr.mxu0 0.0
    %1954 = vmatpush1.msra.mxu0 0.0
    %1955 = vmatprep.subr.mxu0 0.0
    %1956 = vmatpush1.msra.mxu0 0.0
    %1957 = vmatprep.subr.mxu0 0.0
    %1958 = vmatpush1.msra.mxu0 0.0
    %1959 = vmatprep.subr.mxu0 0.0
    %1960 = vmatpush1.msra.mxu0 0.0
    %1961 = vmatprep.subr.mxu0 0.0
    %1962 = vmatpush1.msra.mxu0 0.0
    %1963 = vmatprep.subr.mxu0 0.0
    %1964 = vmatpush1.msra.mxu0 0.0
    %1965 = vmatprep.subr.mxu0 0.0
    %1966 = vmatpush1.msra.mxu0 0.0
    %1967 = vmatprep.subr.mxu0 0.0
    %1968 = vmatpush1.msra.mxu0 0.0
    %1969 = vmatprep.subr.mxu0 0.0
    %1970 = vmatpush1.msra.mxu0 0.0
    %1971 = vmatprep.subr.mxu0 0.0
    %1972 = vmatpush1.msra.mxu0 0.0
    %1973 = vmatprep.subr.mxu0 0.0
    %1974 = vmatpush1.msra.mxu0 0.0
    %1975 = vmatprep.subr.mxu0 0.0
    %1976 = vmatpush1.msra.mxu0 0.0
    %1977 = vmatprep.subr.mxu0 0.0
    %1978 = vmatpush1.msra.mxu0 0.0
    %1979 = vmatprep.subr.mxu0 0.0
    %1980 = vmatpush1.msra.mxu0 0.0
    %1981 = vmatprep.subr.mxu0 0.0
    %1982 = vmatpush1.msra.mxu0 0.0
    %1983 = vmatprep.subr.mxu0 0.0
    %1984 = vmatpush1.msra.mxu0 0.0
    %1985 = vmatprep.subr.mxu0 0.0
    %1986 = vmatpush1.msra.mxu0 0.0
    %1987 = vmatprep.subr.mxu0 0.0
    %1988 = vmatpush1.msra.mxu0 0.0
    %1989 = vmatprep.subr.mxu0 0.0
    %1990 = vmatpush1.msra.mxu0 0.0
    %1991 = vmatprep.subr.mxu0 0.0
    %1992 = vmatpush1.msra.mxu0 0.0
    %1993 = vmatprep.subr.mxu0 0.0
    %1994 = vmatpush1.msra.mxu0 0.0
    %1995 = vmatprep.subr.mxu0 0.0
    %1996 = vmatpush1.msra.mxu0 0.0
    %1997 = vmatprep.subr.mxu0 0.0
    %1998 = vmatpush1.msra.mxu0 0.0
    %1999 = vmatprep.subr.mxu0 0.0
    %2000 = vmatpush1.msra.mxu0 0.0
    %2001 = vmatprep.mubr.f32.mxu0 0.0
    %2002 = vmatmul.mubr.f32.gmra.mrb[0].mxu0 %v1932
    %v2003 = vpop.f32.mrb[0].mxu0
    %v2004 = vadd.f32 %v48, %v2003
    %v2005 = vpop.f32.mrb[0].mxu0
    %2006 = vmatprep.mubr.f32.mxu0 0.0
    %2007 = vmatmul.mubr.f32.gmra.mrb[0].mxu0 %v1935
    %v2008 = vpop.f32.mrb[0].mxu0
    %v2009 = vadd.f32 %v48, %v2008
    %v2010 = vpop.f32.mrb[0].mxu0
    %2011 = vdwg.mxu0
    %v2012 = vadd.f32 %v1837, %v2004
    %v2013 = vadd.f32 %v1838, %v2009
    %v2014 = vsel %vm51, %v2012, 0.0
    %2015 = vadd.xlane.f32.xlu0 %v2014
    %v2016 = vpop.xlane.xlu0 %2015
    %v2017 = vsel %vm51, %v2013, 0.0
    %2018 = vadd.xlane.f32.xlu0 %v2017
    %v2019 = vpop.xlane.xlu0 %2018
    %v2020 = vmul.f32 %v2016, %v1814
    %v2021 = vmul.f32 %v2019, %v1814
    %v2022 = vsub.f32 %v2012, %v2020
    %v2023 = vsub.f32 %v2013, %v2021
    %v2024 = vmul.f32 %v2022, %v2022
    %v2025 = vmul.f32 %v2023, %v2023
    %v2026 = vsel %vm51, %v2024, 0.0
    %2027 = vadd.xlane.f32.xlu0 %v2026
    %v2028 = vpop.xlane.xlu0 %2027
    %v2029 = vsel %vm51, %v2025, 0.0
    %2030 = vadd.xlane.f32.xlu0 %v2029
    %v2031 = vpop.xlane.xlu0 %2030
    %v2032 = vmul.f32 %v2028, %v1814
    %v2033 = vmul.f32 %v2031, %v1814
    %v2034 = vadd.f32 %v2032, 1e-05
    %v2035 = vadd.f32 %v2033, 1e-05
    %v2036 = vrsqrt.pop %v2034
    %v2037 = vrsqrt.pop %v2035
    %v2038 = vmul.f32 %v2022, %v2036
    %v2039 = vmul.f32 %v2023, %v2037
    %v2040 = vmul.f32 %v2038, %v49
    %v2041 = vmul.f32 %v2039, %v49
    %v2042 = vadd.f32 %v2040, %v50
    %v2043 = vadd.f32 %v2041, %v50
    %2044 = vst.msk [vmem:[#allocation5] sm:$0xff] %vm51, %v2042
    %2045 = vst.msk [vmem:[#allocation5 + $0x8] sm:$0xff] %vm51, %v2043
    // Predicated region
    $region18: #{tpu_custom_call.1} parent=1 // pred_check
      _
    $region19: #{tpu_custom_call.1} parent=1 // pred_check_branch
      %2047 = sbr.rel (0) target = $region21
    $region20: #{tpu_custom_call.1} parent=1 // pred_region
      %s2049 = ssub.s32 256, 256
      %2050 = vsyncadd [#allocation4], %s2049
      %s2051 = sshll.u32 [#allocation5], 4
      %s2052 = int_to_ptr.vmem [resolvable:$true] %s2051
      %2057 = dma.vmem_to_hbm [thread:$0]  %s2052, 256, %s3, [#allocation4], 128, 128, 8
    $region21: #{tpu_custom_call.1} parent=1 // pred_fallthru
      _
    // Predicated region
    $region22: #{tpu_custom_call.1} parent=1 // pred_check
      _
    $region23: #{tpu_custom_call.1} parent=1 // pred_check_branch
      %2059 = sbr.rel (0) target = $region25
    $region24: #{tpu_custom_call.1} parent=1 // pred_region
      %2060 = dma.done [#allocation4], 256
    $region25: #{tpu_custom_call.1} parent=1 // pred_fallthru
      _
    %2061 = vsyncpa [#allocation3], 1
    %2062 = vsyncpa [#allocation4], 1

</llo_original>
